<compile_context>
chip_gen: v5e
topology: v5e:2x2
jax: 0.10.0
libtpu: 0.0.40
codegen_flags: <defaults>
</compile_context>

<pallas_src>
import functools

import numpy as np
import jax
import jax.numpy as jnp
from jax.experimental import pallas as pl
from jax.experimental.pallas import tpu as pltpu

LANE = 128
BN_EPS = 1e-5
NORM_EPS = 1e-12  # F.normalize default


def _round_up(x, m):
    return ((x + m - 1) // m) * m


def _pad2d(w, kp, np_):
    k, n = w.shape
    return jnp.zeros((kp, np_), jnp.float32).at[:k, :n].set(w.astype(jnp.float32))


def _pad_bias(b, np_):
    return jnp.zeros((1, np_), jnp.float32).at[0, :b.shape[0]].set(b.astype(jnp.float32))


# ---------------------------------------------------------------------------
# Pallas kernels
# ---------------------------------------------------------------------------
def _mm_bias_kernel(a_ref, w_ref, b_ref, o_ref, *, relu):
    out = jnp.dot(a_ref[...], w_ref[...], preferred_element_type=jnp.float32) + b_ref[...]
    if relu:
        out = jnp.maximum(out, 0.0)
    o_ref[...] = out.astype(o_ref.dtype)


def fused_matmul(a, w, b, relu=False):
    """out = relu?(a @ w + b).  a:(M,Kp), w:(Kp,Np), b:(1,Np). Single K/N block."""
    m, kp = a.shape
    kp2, np_ = w.shape
    assert kp == kp2
    bm = LANE if m % LANE == 0 else m
    return pl.pallas_call(
        functools.partial(_mm_bias_kernel, relu=relu),
        out_shape=jax.ShapeDtypeStruct((m, np_), jnp.float32),
        grid_spec=pltpu.PrefetchScalarGridSpec(
            num_scalar_prefetch=0,
            grid=(m // bm,),
            in_specs=[
                pl.BlockSpec((bm, kp), lambda i: (i, 0)),
                pl.BlockSpec((kp, np_), lambda i: (0, 0)),
                pl.BlockSpec((1, np_), lambda i: (0, 0)),
            ],
            out_specs=pl.BlockSpec((bm, np_), lambda i: (i, 0)),
        ),
        compiler_params=pltpu.CompilerParams(dimension_semantics=("parallel",)),
    )(a, w, b)


def _aspp_cls_kernel(x_ref, g_ref, wb_ref, bb_ref, wc_ref, bc_ref, wk_ref, bk_ref, o_ref):
    # local ASPP branches (already packed along output channels, BN folded) + ReLU
    local = jnp.dot(x_ref[...], wb_ref[...], preferred_element_type=jnp.float32) + bb_ref[...]
    local = jnp.maximum(local, 0.0)
    # concat 1x1 (global branch enters as a precomputed per-row additive term) + ReLU
    feat = jnp.dot(local, wc_ref[...], preferred_element_type=jnp.float32)
    feat = jnp.maximum(feat + g_ref[...] + bc_ref[...], 0.0)
    # classifier 1x1 (no BN / ReLU)
    out = jnp.dot(feat, wk_ref[...], preferred_element_type=jnp.float32) + bk_ref[...]
    o_ref[...] = out.astype(o_ref.dtype)


def aspp_cls_fused(rows, g_rows, wb, bb, wc, bc, wk, bk):
    m, cp = rows.shape
    nb = wb.shape[1]
    bm = LANE if m % LANE == 0 else m
    return pl.pallas_call(
        _aspp_cls_kernel,
        out_shape=jax.ShapeDtypeStruct((m, LANE), jnp.float32),
        grid_spec=pltpu.PrefetchScalarGridSpec(
            num_scalar_prefetch=0,
            grid=(m // bm,),
            in_specs=[
                pl.BlockSpec((bm, cp), lambda i: (i, 0)),
                pl.BlockSpec((bm, LANE), lambda i: (i, 0)),
                pl.BlockSpec((cp, nb), lambda i: (0, 0)),
                pl.BlockSpec((1, nb), lambda i: (0, 0)),
                pl.BlockSpec((nb, LANE), lambda i: (0, 0)),
                pl.BlockSpec((1, LANE), lambda i: (0, 0)),
                pl.BlockSpec((LANE, LANE), lambda i: (0, 0)),
                pl.BlockSpec((1, LANE), lambda i: (0, 0)),
            ],
            out_specs=pl.BlockSpec((bm, LANE), lambda i: (i, 0)),
        ),
        compiler_params=pltpu.CompilerParams(dimension_semantics=("parallel",)),
    )(rows, g_rows, wb, bb, wc, bc, wk, bk)


def _proj_norm_kernel(x_ref, w1_ref, b1_ref, w2_ref, b2_ref, o_ref):
    h = jnp.dot(x_ref[...], w1_ref[...], preferred_element_type=jnp.float32) + b1_ref[...]
    h = jnp.maximum(h, 0.0)
    e = jnp.dot(h, w2_ref[...], preferred_element_type=jnp.float32) + b2_ref[...]
    nrm = jnp.sqrt(jnp.sum(e * e, axis=-1, keepdims=True))   # padded lanes are exactly 0
    o_ref[...] = (e / jnp.maximum(nrm, NORM_EPS)).astype(o_ref.dtype)


def proj_norm_fused(rows, w1, b1, w2, b2):
    m, cp = rows.shape
    bm = LANE if m % LANE == 0 else m
    return pl.pallas_call(
        _proj_norm_kernel,
        out_shape=jax.ShapeDtypeStruct((m, LANE), jnp.float32),
        grid_spec=pltpu.PrefetchScalarGridSpec(
            num_scalar_prefetch=0,
            grid=(m // bm,),
            in_specs=[
                pl.BlockSpec((bm, cp), lambda i: (i, 0)),
                pl.BlockSpec((cp, LANE), lambda i: (0, 0)),
                pl.BlockSpec((1, LANE), lambda i: (0, 0)),
                pl.BlockSpec((LANE, LANE), lambda i: (0, 0)),
                pl.BlockSpec((1, LANE), lambda i: (0, 0)),
            ],
            out_specs=pl.BlockSpec((bm, LANE), lambda i: (i, 0)),
        ),
        compiler_params=pltpu.CompilerParams(dimension_semantics=("parallel",)),
    )(rows, w1, b1, w2, b2)


def _resize_kernel(r_ref, x_ref, o_ref):
    o_ref[...] = jnp.dot(r_ref[...], x_ref[...],
                         preferred_element_type=jnp.float32).astype(o_ref.dtype)


def _interp_matrix(out_size, in_size):
    # align_corners=True bilinear interpolation matrix (out_size, in_size)
    r = np.zeros((out_size, in_size), np.float32)
    for o in range(out_size):
        s = o * (in_size - 1) / (out_size - 1) if out_size > 1 else 0.0
        i0 = min(int(np.floor(s)), in_size - 1)
        i1 = min(i0 + 1, in_size - 1)
        w1 = s - i0
        r[o, i0] += 1.0 - w1
        r[o, i1] += w1
    return r


def bilinear_resize_rows(rows, n, hf, wf, h, w):
    """rows: (n*hf*wf, LANE) -> (n*h*w, LANE), align_corners=True bilinear per image."""
    hw_in, hw_out = hf * wf, h * w
    kp = _round_up(hw_in, LANE)
    r2d = np.zeros((hw_out, kp), np.float32)
    r2d[:, :hw_in] = np.kron(_interp_matrix(h, hf), _interp_matrix(w, wf))
    r2d = jnp.asarray(r2d)                                   # trace-time constant
    x = rows.reshape(n, hw_in, LANE)
    x = jnp.pad(x, ((0, 0), (0, kp - hw_in), (0, 0)))
    out = pl.pallas_call(
        _resize_kernel,
        out_shape=jax.ShapeDtypeStruct((n, hw_out, LANE), jnp.float32),
        grid_spec=pltpu.PrefetchScalarGridSpec(
            num_scalar_prefetch=0,
            grid=(n,),
            in_specs=[
                pl.BlockSpec((hw_out, kp), lambda i: (0, 0)),
                pl.BlockSpec((None, kp, LANE), lambda i: (i, 0, 0)),
            ],
            out_specs=pl.BlockSpec((None, hw_out, LANE), lambda i: (i, 0, 0)),
        ),
        compiler_params=pltpu.CompilerParams(dimension_semantics=("parallel",)),
    )(r2d, x)
    return out.reshape(n * hw_out, LANE)


# ---------------------------------------------------------------------------
# Conv glue (im2col on channels-last, real channels only)
# ---------------------------------------------------------------------------
def im2col_nhwc(x, kh, kw, stride=1, dilation=1, padding=0):
    n, h, w, c = x.shape
    xp = jnp.pad(x, ((0, 0), (padding, padding), (padding, padding), (0, 0)))
    ho = (h + 2 * padding - dilation * (kh - 1) - 1) // stride + 1
    wo = (w + 2 * padding - dilation * (kw - 1) - 1) // stride + 1
    taps = []
    for i in range(kh):
        for j in range(kw):
            taps.append(xp[:, i * dilation: i * dilation + stride * (ho - 1) + 1: stride,
                              j * dilation: j * dilation + stride * (wo - 1) + 1: stride, :])
    col = jnp.stack(taps, axis=-1)                    # (n, ho, wo, c, kh*kw) -> c-major
    return col.reshape(n, ho, wo, c * kh * kw), ho, wo


def conv3x3_rows(x_nhwc, w_p, b_p, stride, padding):
    """3x3 conv (+bias+ReLU) on NHWC input, returns lane-padded output rows."""
    n = x_nhwc.shape[0]
    col, ho, wo = im2col_nhwc(x_nhwc, 3, 3, stride=stride, dilation=1, padding=padding)
    k = col.shape[-1]
    kp = w_p.shape[0]
    rows = col.reshape(n * ho * wo, k)
    rows = jnp.pad(rows, ((0, 0), (0, kp - k)))
    return fused_matmul(rows, w_p, b_p, relu=True), ho, wo


# ---------------------------------------------------------------------------
# deeplabv3_contrast parameters + forward
# ---------------------------------------------------------------------------
CFG = dict(
    IN_CH=4,             # input image channels
    BB_MID=16,           # synthetic backbone hidden channels
    BB_OUT=32,           # backbone.OUTPUT_DIM (dim_in)
    ASPP_OUTDIM=32,      # cfg.MODEL_ASPP_OUTDIM
    NUM_CLASSES=6,       # cfg.MODEL_NUM_CLASSES
    EMBEDDING_DIM=16,    # cfg.EMBEDDING_DIM
    HAS_GLOBAL=True,     # cfg.MODEL_ASPP_HASGLOBAL
    ASPP_RATES=(0, 6, 12, 18),
)


def _kaiming(key, cout, cin, kh, kw):
    fan_out = cout * kh * kw
    std = np.sqrt(2.0 / fan_out)
    return jax.random.normal(key, (cout, cin, kh, kw), jnp.float32) * std


def _bias_init(key, cout, fan_in):
    bound = 1.0 / np.sqrt(fan_in)
    return jax.random.uniform(key, (cout,), jnp.float32, -bound, bound)


def init_params(key, cfg):
    ks = jax.random.split(key, 32)
    c_in, mid, din = cfg["IN_CH"], cfg["BB_MID"], cfg["BB_OUT"]
    dout, ncls, pdim = cfg["ASPP_OUTDIM"], cfg["NUM_CLASSES"], cfg["EMBEDDING_DIM"]
    nbr = 5 if cfg["HAS_GLOBAL"] else 4
    p = {}
    # TODO(synk): real ResNet/Xception backbone not provided; synthetic 2-layer stride-2 CNN.
    p["bb_w1"] = _kaiming(ks[0], mid, c_in, 3, 3); p["bb_b1"] = _bias_init(ks[1], mid, c_in * 9)
    p["bb_w2"] = _kaiming(ks[2], din, mid, 3, 3);  p["bb_b2"] = _bias_init(ks[3], din, mid * 9)
    # TODO(synk): ASPP source not provided; standard deeplabv3+ ASPP (1x1, 3x3 d6/12/18, global).
    p["aspp_b1_w"] = _kaiming(ks[4], dout, din, 1, 1)[:, :, 0, 0]; p["aspp_b1_b"] = _bias_init(ks[5], dout, din)
    p["aspp_b2_w"] = _kaiming(ks[6], dout, din, 3, 3);  p["aspp_b2_b"] = _bias_init(ks[7], dout, din * 9)
    p["aspp_b3_w"] = _kaiming(ks[8], dout, din, 3, 3);  p["aspp_b3_b"] = _bias_init(ks[9], dout, din * 9)
    p["aspp_b4_w"] = _kaiming(ks[10], dout, din, 3, 3); p["aspp_b4_b"] = _bias_init(ks[11], dout, din * 9)
    p["aspp_g_w"] = _kaiming(ks[12], dout, din, 1, 1)[:, :, 0, 0]; p["aspp_g_b"] = _bias_init(ks[13], dout, din)
    p["aspp_cat_w"] = _kaiming(ks[14], dout, nbr * dout, 1, 1)[:, :, 0, 0]
    p["aspp_cat_b"] = _bias_init(ks[15], dout, nbr * dout)
    # heads defined in deeplabv3_contrast itself
    p["cls_w"] = _kaiming(ks[16], ncls, dout, 1, 1)[:, :, 0, 0]; p["cls_b"] = _bias_init(ks[17], ncls, dout)
    p["proj1_w"] = _kaiming(ks[18], din, din, 1, 1)[:, :, 0, 0];  p["proj1_b"] = _bias_init(ks[19], din, din)
    p["proj2_w"] = _kaiming(ks[20], pdim, din, 1, 1)[:, :, 0, 0]; p["proj2_b"] = _bias_init(ks[21], pdim, din)
    return p


def prepare_params(p, cfg):
    """Pad weights to lane multiples once, fold eval-mode BN (mean=0, var=1, g=1, b=0)."""
    s = float(1.0 / np.sqrt(1.0 + BN_EPS))
    cin, mid, din, dout = cfg["IN_CH"], cfg["BB_MID"], cfg["BB_OUT"], cfg["ASPP_OUTDIM"]
    q = {}
    # backbone (no BN)
    q["bb1_w"] = _pad2d(p["bb_w1"].reshape(mid, cin * 9).T, _round_up(cin * 9, LANE), LANE)
    q["bb1_b"] = _pad_bias(p["bb_b1"], LANE)
    q["bb2_w"] = _pad2d(p["bb_w2"].reshape(din, mid * 9).T, _round_up(mid * 9, LANE), LANE)
    q["bb2_b"] = _pad_bias(p["bb_b2"], LANE)
    # ASPP local branches: rate-0 1x1 + centre taps of dilated 3x3s, BN folded, packed on N
    wloc = jnp.concatenate([p["aspp_b1_w"].T,
                            p["aspp_b2_w"][:, :, 1, 1].T,
                            p["aspp_b3_w"][:, :, 1, 1].T,
                            p["aspp_b4_w"][:, :, 1, 1].T], axis=1) * s     # (din, 4*dout)
    bloc = jnp.concatenate([p["aspp_b1_b"], p["aspp_b2_b"],
                            p["aspp_b3_b"], p["aspp_b4_b"]]) * s           # (4*dout,)
    nb = _round_up(4 * dout, LANE)
    q["aspp_local_w"] = _pad2d(wloc, LANE, nb)
    q["aspp_local_b"] = _pad_bias(bloc, nb)
    # ASPP concat 1x1 (BN folded), split into local / global contributions
    wcat = p["aspp_cat_w"]                                                  # (dout, nbr*dout)
    q["cat_local_w"] = _pad2d(wcat[:, :4 * dout].T * s, nb, LANE)
    q["cat_b"] = _pad_bias(p["aspp_cat_b"] * s, LANE)
    if cfg["HAS_GLOBAL"]:
        q["aspp_g_w"] = _pad2d(p["aspp_g_w"].T * s, LANE, LANE)
        q["aspp_g_b"] = _pad_bias(p["aspp_g_b"] * s, LANE)
        q["cat_g_w"] = _pad2d(wcat[:, 4 * dout:].T * s, LANE, LANE)
    # classifier (no BN)
    q["cls_w"] = _pad2d(p["cls_w"].T, LANE, LANE)
    q["cls_b"] = _pad_bias(p["cls_b"], LANE)
    # projection head (BN folded into first conv)
    q["proj1_w"] = _pad2d(p["proj1_w"].T * s, LANE, LANE)
    q["proj1_b"] = _pad_bias(p["proj1_b"] * s, LANE)
    q["proj2_w"] = _pad2d(p["proj2_w"].T, LANE, LANE)
    q["proj2_b"] = _pad_bias(p["proj2_b"], LANE)
    return q


def deeplabv3_contrast_forward(q, x, cfg):
    n, c, h, w = x.shape
    mid, ncls, pdim = cfg["BB_MID"], cfg["NUM_CLASSES"], cfg["EMBEDDING_DIM"]

    # ---- backbone -> x_bottom as lane-padded channels-last rows ----
    x_nhwc = jnp.transpose(x, (0, 2, 3, 1)).astype(jnp.float32)
    y_rows, h1, w1 = conv3x3_rows(x_nhwc, q["bb1_w"], q["bb1_b"], stride=2, padding=1)
    y_nhwc = y_rows.reshape(n, h1, w1, LANE)[..., :mid]      # slice real channels for im2col
    xb_rows, hf, wf = conv3x3_rows(y_nhwc, q["bb2_w"], q["bb2_b"], stride=2, padding=1)

    # ---- ASPP + classifier, fused into one kernel ----
    rates = [r for r in cfg["ASPP_RATES"] if r > 0]
    if min(rates) < max(hf, wf):
        # TODO(synk): general dilated-conv (im2col) path for feature maps larger than the
        # smallest ASPP rate is not implemented; for rate >= H,W the dilated 3x3 reduces
        # exactly to its centre tap (all other taps read zero padding), which is fused here.
        raise NotImplementedError("feature map larger than smallest ASPP rate")

    m = n * hf * wf
    if cfg["HAS_GLOBAL"]:
        # Global-average branch: per-image vectors (tiny) computed with XLA and folded into
        # the fused cat-conv kernel as a per-row additive term.
        pooled = jnp.mean(xb_rows.reshape(n, hf * wf, LANE), axis=1)        # (n, LANE)
        g = jnp.maximum(pooled @ q["aspp_g_w"] + q["aspp_g_b"], 0.0)        # conv1x1+BN+ReLU
        g_rows = jnp.repeat(g @ q["cat_g_w"], hf * wf, axis=0)              # (m, LANE)
    else:
        g_rows = jnp.zeros((m, LANE), jnp.float32)

    logits_rows = aspp_cls_fused(xb_rows, g_rows,
                                 q["aspp_local_w"], q["aspp_local_b"],
                                 q["cat_local_w"], q["cat_b"],
                                 q["cls_w"], q["cls_b"])

    # ---- bilinear align_corners=True upsample to input resolution ----
    pred_rows = bilinear_resize_rows(logits_rows, n, hf, wf, h, w)
    pred_seg = jnp.transpose(pred_rows.reshape(n, h, w, LANE)[..., :ncls], (0, 3, 1, 2))

    # ---- projection head + channel L2 normalize (fused) ----
    embed_rows = proj_norm_fused(xb_rows, q["proj1_w"], q["proj1_b"],
                                 q["proj2_w"], q["proj2_b"])
    embed = jnp.transpose(embed_rows.reshape(n, hf, wf, LANE)[..., :pdim], (0, 3, 1, 2))

    return {"embed": embed, "pred_seg": pred_seg}


if __name__ == "__main__":
    key = jax.random.PRNGKey(0)
    pkey, xkey = jax.random.split(key)
    params = prepare_params(init_params(pkey, CFG), CFG)
    x = jax.random.normal(xkey, (2, CFG["IN_CH"], 16, 16), jnp.float32)  # NCHW

    fwd = jax.jit(functools.partial(deeplabv3_contrast_forward, cfg=CFG))
    out = jax.block_until_ready(fwd(params, x))

    assert out["pred_seg"].shape == (2, CFG["NUM_CLASSES"], 16, 16)
    assert out["embed"].shape == (2, CFG["EMBEDDING_DIM"], 4, 4)
    print("KERNEL_OK")
</pallas_src>

<mosaic_0001>
module attributes {stable_mosaic.version = 11 : i64} {
  func.func @_mm_bias_kernel(%arg0: i32, %arg1: memref<128x128xf32, #tpu.memory_space<vmem>>, %arg2: memref<128x128xf32, #tpu.memory_space<vmem>>, %arg3: memref<1x128xf32, #tpu.memory_space<vmem>>, %arg4: memref<128x128xf32, #tpu.memory_space<vmem>>) attributes {dimension_semantics = [#tpu.dimension_semantics<parallel>], iteration_bounds = array<i64: 1>, scalar_prefetch = 0 : i64, scratch_operands = 0 : i64, tpu.core_type = #tpu.core_type<tc>, window_params = [{transform_indices = @transform_0, window_bounds = array<i64: 128, 128>}, {pipeline_mode = #tpu.pipeline_mode<synchronous>, transform_indices = @transform_1, window_bounds = array<i64: 128, 128>}, {pipeline_mode = #tpu.pipeline_mode<synchronous>, transform_indices = @transform_2, window_bounds = array<i64: 1, 128>}, {transform_indices = @transform_3, window_bounds = array<i64: 128, 128>}]} {
    %c0 = arith.constant 0 : index
    %c0_0 = arith.constant 0 : index
    %0 = vector.load %arg1[%c0, %c0_0] : memref<128x128xf32, #tpu.memory_space<vmem>>, vector<128x128xf32>
    %c0_1 = arith.constant 0 : index
    %c0_2 = arith.constant 0 : index
    %1 = vector.load %arg2[%c0_1, %c0_2] : memref<128x128xf32, #tpu.memory_space<vmem>>, vector<128x128xf32>
    %cst = arith.constant dense<0.000000e+00> : vector<128x128xf32>
    %2 = tpu.matmul %0, %1, %cst {dimension_numbers = #tpu.dot_dimension_numbers<[1], [0], [0], [1], [0, 0, 1, 1], [], []>} : vector<128x128xf32>, vector<128x128xf32>, vector<128x128xf32> -> vector<128x128xf32>
    %c0_3 = arith.constant 0 : index
    %c0_4 = arith.constant 0 : index
    %3 = vector.load %arg3[%c0_3, %c0_4] : memref<1x128xf32, #tpu.memory_space<vmem>>, vector<1x128xf32>
    %4 = vector.broadcast %3 : vector<1x128xf32> to vector<128x128xf32>
    %5 = arith.addf %2, %4 : vector<128x128xf32>
    %cst_5 = arith.constant 0.000000e+00 : f32
    %6 = vector.broadcast %cst_5 : f32 to vector<128x128xf32>
    %7 = arith.maximumf %5, %6 : vector<128x128xf32>
    %c0_6 = arith.constant 0 : index
    %c0_7 = arith.constant 0 : index
    %8 = vector.load %arg4[%c0_6, %c0_7] : memref<128x128xf32, #tpu.memory_space<vmem>>, vector<128x128xf32>
    tpu.vector_store %arg4[%c0_6, %c0_7], %7 {strides = array<i32>} : memref<128x128xf32, #tpu.memory_space<vmem>>, vector<128x128xf32>,
    return
  }
  func.func @transform_0(%arg0: i32) -> (i32, i32) {
    %c0_i32 = arith.constant 0 : i32
    %c0_i32_0 = arith.constant 0 : i32
    return %arg0, %c0_i32 : i32, i32
  }
  func.func @transform_1(%arg0: i32) -> (i32, i32) {
    %c0_i32 = arith.constant 0 : i32
    %c0_i32_0 = arith.constant 0 : i32
    %c0_i32_1 = arith.constant 0 : i32
    return %c0_i32, %c0_i32_0 : i32, i32
  }
  func.func @transform_2(%arg0: i32) -> (i32, i32) {
    %c0_i32 = arith.constant 0 : i32
    %c0_i32_0 = arith.constant 0 : i32
    %c0_i32_1 = arith.constant 0 : i32
    return %c0_i32, %c0_i32_0 : i32, i32
  }
  func.func @transform_3(%arg0: i32) -> (i32, i32) {
    %c0_i32 = arith.constant 0 : i32
    %c0_i32_0 = arith.constant 0 : i32
    return %arg0, %c0_i32 : i32, i32
  }
}

module attributes {stable_mosaic.version = 11 : i64} {
  func.func @_mm_bias_kernel(%arg0: i32, %arg1: memref<32x256xf32, #tpu.memory_space<vmem>>, %arg2: memref<256x128xf32, #tpu.memory_space<vmem>>, %arg3: memref<1x128xf32, #tpu.memory_space<vmem>>, %arg4: memref<32x128xf32, #tpu.memory_space<vmem>>) attributes {dimension_semantics = [#tpu.dimension_semantics<parallel>], iteration_bounds = array<i64: 1>, scalar_prefetch = 0 : i64, scratch_operands = 0 : i64, tpu.core_type = #tpu.core_type<tc>, window_params = [{transform_indices = @transform_0, window_bounds = array<i64: 32, 256>}, {pipeline_mode = #tpu.pipeline_mode<synchronous>, transform_indices = @transform_1, window_bounds = array<i64: 256, 128>}, {pipeline_mode = #tpu.pipeline_mode<synchronous>, transform_indices = @transform_2, window_bounds = array<i64: 1, 128>}, {transform_indices = @transform_3, window_bounds = array<i64: 32, 128>}]} {
    %c0 = arith.constant 0 : index
    %c0_0 = arith.constant 0 : index
    %0 = vector.load %arg1[%c0, %c0_0] : memref<32x256xf32, #tpu.memory_space<vmem>>, vector<32x256xf32>
    %c0_1 = arith.constant 0 : index
    %c0_2 = arith.constant 0 : index
    %1 = vector.load %arg2[%c0_1, %c0_2] : memref<256x128xf32, #tpu.memory_space<vmem>>, vector<256x128xf32>
    %cst = arith.constant dense<0.000000e+00> : vector<32x128xf32>
    %2 = tpu.matmul %0, %1, %cst {dimension_numbers = #tpu.dot_dimension_numbers<[1], [0], [0], [1], [0, 0, 1, 1], [], []>} : vector<32x256xf32>, vector<256x128xf32>, vector<32x128xf32> -> vector<32x128xf32>
    %c0_3 = arith.constant 0 : index
    %c0_4 = arith.constant 0 : index
    %3 = vector.load %arg3[%c0_3, %c0_4] : memref<1x128xf32, #tpu.memory_space<vmem>>, vector<1x128xf32>
    %4 = vector.broadcast %3 : vector<1x128xf32> to vector<32x128xf32>
    %5 = arith.addf %2, %4 : vector<32x128xf32>
    %cst_5 = arith.constant 0.000000e+00 : f32
    %6 = vector.broadcast %cst_5 : f32 to vector<32x128xf32>
    %7 = arith.maximumf %5, %6 : vector<32x128xf32>
    %c0_6 = arith.constant 0 : index
    %c0_7 = arith.constant 0 : index
    %8 = vector.load %arg4[%c0_6, %c0_7] : memref<32x128xf32, #tpu.memory_space<vmem>>, vector<32x128xf32>
    tpu.vector_store %arg4[%c0_6, %c0_7], %7 {strides = array<i32>} : memref<32x128xf32, #tpu.memory_space<vmem>>, vector<32x128xf32>,
    return
  }
  func.func @transform_0(%arg0: i32) -> (i32, i32) {
    %c0_i32 = arith.constant 0 : i32
    %c0_i32_0 = arith.constant 0 : i32
    return %arg0, %c0_i32 : i32, i32
  }
  func.func @transform_1(%arg0: i32) -> (i32, i32) {
    %c0_i32 = arith.constant 0 : i32
    %c0_i32_0 = arith.constant 0 : i32
    %c0_i32_1 = arith.constant 0 : i32
    return %c0_i32, %c0_i32_0 : i32, i32
  }
  func.func @transform_2(%arg0: i32) -> (i32, i32) {
    %c0_i32 = arith.constant 0 : i32
    %c0_i32_0 = arith.constant 0 : i32
    %c0_i32_1 = arith.constant 0 : i32
    return %c0_i32, %c0_i32_0 : i32, i32
  }
  func.func @transform_3(%arg0: i32) -> (i32, i32) {
    %c0_i32 = arith.constant 0 : i32
    %c0_i32_0 = arith.constant 0 : i32
    return %arg0, %c0_i32 : i32, i32
  }
}

module attributes {stable_mosaic.version = 11 : i64} {
  func.func @_aspp_cls_kernel(%arg0: i32, %arg1: memref<32x128xf32, #tpu.memory_space<vmem>>, %arg2: memref<32x128xf32, #tpu.memory_space<vmem>>, %arg3: memref<128x128xf32, #tpu.memory_space<vmem>>, %arg4: memref<1x128xf32, #tpu.memory_space<vmem>>, %arg5: memref<128x128xf32, #tpu.memory_space<vmem>>, %arg6: memref<1x128xf32, #tpu.memory_space<vmem>>, %arg7: memref<128x128xf32, #tpu.memory_space<vmem>>, %arg8: memref<1x128xf32, #tpu.memory_space<vmem>>, %arg9: memref<32x128xf32, #tpu.memory_space<vmem>>) attributes {dimension_semantics = [#tpu.dimension_semantics<parallel>], iteration_bounds = array<i64: 1>, scalar_prefetch = 0 : i64, scratch_operands = 0 : i64, tpu.core_type = #tpu.core_type<tc>, window_params = [{transform_indices = @transform_0, window_bounds = array<i64: 32, 128>}, {transform_indices = @transform_1, window_bounds = array<i64: 32, 128>}, {pipeline_mode = #tpu.pipeline_mode<synchronous>, transform_indices = @transform_2, window_bounds = array<i64: 128, 128>}, {pipeline_mode = #tpu.pipeline_mode<synchronous>, transform_indices = @transform_3, window_bounds = array<i64: 1, 128>}, {pipeline_mode = #tpu.pipeline_mode<synchronous>, transform_indices = @transform_4, window_bounds = array<i64: 128, 128>}, {pipeline_mode = #tpu.pipeline_mode<synchronous>, transform_indices = @transform_5, window_bounds = array<i64: 1, 128>}, {pipeline_mode = #tpu.pipeline_mode<synchronous>, transform_indices = @transform_6, window_bounds = array<i64: 128, 128>}, {pipeline_mode = #tpu.pipeline_mode<synchronous>, transform_indices = @transform_7, window_bounds = array<i64: 1, 128>}, {transform_indices = @transform_8, window_bounds = array<i64: 32, 128>}]} {
    %c0 = arith.constant 0 : index
    %c0_0 = arith.constant 0 : index
    %0 = vector.load %arg1[%c0, %c0_0] : memref<32x128xf32, #tpu.memory_space<vmem>>, vector<32x128xf32>
    %c0_1 = arith.constant 0 : index
    %c0_2 = arith.constant 0 : index
    %1 = vector.load %arg3[%c0_1, %c0_2] : memref<128x128xf32, #tpu.memory_space<vmem>>, vector<128x128xf32>
    %cst = arith.constant dense<0.000000e+00> : vector<32x128xf32>
    %2 = tpu.matmul %0, %1, %cst {dimension_numbers = #tpu.dot_dimension_numbers<[1], [0], [0], [1], [0, 0, 1, 1], [], []>} : vector<32x128xf32>, vector<128x128xf32>, vector<32x128xf32> -> vector<32x128xf32>
    %c0_3 = arith.constant 0 : index
    %c0_4 = arith.constant 0 : index
    %3 = vector.load %arg4[%c0_3, %c0_4] : memref<1x128xf32, #tpu.memory_space<vmem>>, vector<1x128xf32>
    %4 = vector.broadcast %3 : vector<1x128xf32> to vector<32x128xf32>
    %5 = arith.addf %2, %4 : vector<32x128xf32>
    %cst_5 = arith.constant 0.000000e+00 : f32
    %6 = vector.broadcast %cst_5 : f32 to vector<32x128xf32>
    %7 = arith.maximumf %5, %6 : vector<32x128xf32>
    %c0_6 = arith.constant 0 : index
    %c0_7 = arith.constant 0 : index
    %8 = vector.load %arg5[%c0_6, %c0_7] : memref<128x128xf32, #tpu.memory_space<vmem>>, vector<128x128xf32>
    %cst_8 = arith.constant dense<0.000000e+00> : vector<32x128xf32>
    %9 = tpu.matmul %7, %8, %cst_8 {dimension_numbers = #tpu.dot_dimension_numbers<[1], [0], [0], [1], [0, 0, 1, 1], [], []>} : vector<32x128xf32>, vector<128x128xf32>, vector<32x128xf32> -> vector<32x128xf32>
    %c0_9 = arith.constant 0 : index
    %c0_10 = arith.constant 0 : index
    %10 = vector.load %arg2[%c0_9, %c0_10] : memref<32x128xf32, #tpu.memory_space<vmem>>, vector<32x128xf32>
    %11 = arith.addf %9, %10 : vector<32x128xf32>
    %c0_11 = arith.constant 0 : index
    %c0_12 = arith.constant 0 : index
    %12 = vector.load %arg6[%c0_11, %c0_12] : memref<1x128xf32, #tpu.memory_space<vmem>>, vector<1x128xf32>
    %13 = vector.broadcast %12 : vector<1x128xf32> to vector<32x128xf32>
    %14 = arith.addf %11, %13 : vector<32x128xf32>
    %cst_13 = arith.constant 0.000000e+00 : f32
    %15 = vector.broadcast %cst_13 : f32 to vector<32x128xf32>
    %16 = arith.maximumf %14, %15 : vector<32x128xf32>
    %c0_14 = arith.constant 0 : index
    %c0_15 = arith.constant 0 : index
    %17 = vector.load %arg7[%c0_14, %c0_15] : memref<128x128xf32, #tpu.memory_space<vmem>>, vector<128x128xf32>
    %cst_16 = arith.constant dense<0.000000e+00> : vector<32x128xf32>
    %18 = tpu.matmul %16, %17, %cst_16 {dimension_numbers = #tpu.dot_dimension_numbers<[1], [0], [0], [1], [0, 0, 1, 1], [], []>} : vector<32x128xf32>, vector<128x128xf32>, vector<32x128xf32> -> vector<32x128xf32>
    %c0_17 = arith.constant 0 : index
    %c0_18 = arith.constant 0 : index
    %19 = vector.load %arg8[%c0_17, %c0_18] : memref<1x128xf32, #tpu.memory_space<vmem>>, vector<1x128xf32>
    %20 = vector.broadcast %19 : vector<1x128xf32> to vector<32x128xf32>
    %21 = arith.addf %18, %20 : vector<32x128xf32>
    %c0_19 = arith.constant 0 : index
    %c0_20 = arith.constant 0 : index
    %22 = vector.load %arg9[%c0_19, %c0_20] : memref<32x128xf32, #tpu.memory_space<vmem>>, vector<32x128xf32>
    tpu.vector_store %arg9[%c0_19, %c0_20], %21 {strides = array<i32>} : memref<32x128xf32, #tpu.memory_space<vmem>>, vector<32x128xf32>,
    return
  }
  func.func @transform_0(%arg0: i32) -> (i32, i32) {
    %c0_i32 = arith.constant 0 : i32
    %c0_i32_0 = arith.constant 0 : i32
    return %arg0, %c0_i32 : i32, i32
  }
  func.func @transform_1(%arg0: i32) -> (i32, i32) {
    %c0_i32 = arith.constant 0 : i32
    %c0_i32_0 = arith.constant 0 : i32
    return %arg0, %c0_i32 : i32, i32
  }
  func.func @transform_2(%arg0: i32) -> (i32, i32) {
    %c0_i32 = arith.constant 0 : i32
    %c0_i32_0 = arith.constant 0 : i32
    %c0_i32_1 = arith.constant 0 : i32
    return %c0_i32, %c0_i32_0 : i32, i32
  }
  func.func @transform_3(%arg0: i32) -> (i32, i32) {
    %c0_i32 = arith.constant 0 : i32
    %c0_i32_0 = arith.constant 0 : i32
    %c0_i32_1 = arith.constant 0 : i32
    return %c0_i32, %c0_i32_0 : i32, i32
  }
  func.func @transform_4(%arg0: i32) -> (i32, i32) {
    %c0_i32 = arith.constant 0 : i32
    %c0_i32_0 = arith.constant 0 : i32
    %c0_i32_1 = arith.constant 0 : i32
    return %c0_i32, %c0_i32_0 : i32, i32
  }
  func.func @transform_5(%arg0: i32) -> (i32, i32) {
    %c0_i32 = arith.constant 0 : i32
    %c0_i32_0 = arith.constant 0 : i32
    %c0_i32_1 = arith.constant 0 : i32
    return %c0_i32, %c0_i32_0 : i32, i32
  }
  func.func @transform_6(%arg0: i32) -> (i32, i32) {
    %c0_i32 = arith.constant 0 : i32
    %c0_i32_0 = arith.constant 0 : i32
    %c0_i32_1 = arith.constant 0 : i32
    return %c0_i32, %c0_i32_0 : i32, i32
  }
  func.func @transform_7(%arg0: i32) -> (i32, i32) {
    %c0_i32 = arith.constant 0 : i32
    %c0_i32_0 = arith.constant 0 : i32
    %c0_i32_1 = arith.constant 0 : i32
    return %c0_i32, %c0_i32_0 : i32, i32
  }
  func.func @transform_8(%arg0: i32) -> (i32, i32) {
    %c0_i32 = arith.constant 0 : i32
    %c0_i32_0 = arith.constant 0 : i32
    return %arg0, %c0_i32 : i32, i32
  }
}

module attributes {stable_mosaic.version = 11 : i64} {
  func.func @_resize_kernel(%arg0: i32, %arg1: memref<256x128xf32, #tpu.memory_space<vmem>>, %arg2: memref<1x128x128xf32, #tpu.memory_space<vmem>>, %arg3: memref<1x256x128xf32, #tpu.memory_space<vmem>>) attributes {dimension_semantics = [#tpu.dimension_semantics<parallel>], iteration_bounds = array<i64: 2>, scalar_prefetch = 0 : i64, scratch_operands = 0 : i64, tpu.core_type = #tpu.core_type<tc>, window_params = [{pipeline_mode = #tpu.pipeline_mode<synchronous>, transform_indices = @transform_0, window_bounds = array<i64: 256, 128>}, {transform_indices = @transform_1, window_bounds = array<i64: 1, 128, 128>}, {transform_indices = @transform_2, window_bounds = array<i64: 1, 256, 128>}]} {
    %c0 = arith.constant 0 : index
    %c0_0 = arith.constant 0 : index
    %0 = vector.load %arg1[%c0, %c0_0] : memref<256x128xf32, #tpu.memory_space<vmem>>, vector<256x128xf32>
    %c0_1 = arith.constant 0 : index
    %c0_2 = arith.constant 0 : index
    %c0_3 = arith.constant 0 : index
    %1 = vector.load %arg2[%c0_1, %c0_2, %c0_3] : memref<1x128x128xf32, #tpu.memory_space<vmem>>, vector<1x128x128xf32>
    %2 = vector.shape_cast %1 : vector<1x128x128xf32> to vector<128x128xf32>
    %cst = arith.constant dense<0.000000e+00> : vector<256x128xf32>
    %3 = tpu.matmul %0, %2, %cst {dimension_numbers = #tpu.dot_dimension_numbers<[1], [0], [0], [1], [0, 0, 1, 1], [], []>} : vector<256x128xf32>, vector<128x128xf32>, vector<256x128xf32> -> vector<256x128xf32>
    %c0_4 = arith.constant 0 : index
    %c0_5 = arith.constant 0 : index
    %c0_6 = arith.constant 0 : index
    %4 = vector.load %arg3[%c0_4, %c0_5, %c0_6] : memref<1x256x128xf32, #tpu.memory_space<vmem>>, vector<1x256x128xf32>
    %5 = vector.shape_cast %4 : vector<1x256x128xf32> to vector<256x128xf32>
    %6 = vector.shape_cast %3 : vector<256x128xf32> to vector<1x256x128xf32>
    tpu.vector_store %arg3[%c0_4, %c0_5, %c0_6], %6 {strides = array<i32>} : memref<1x256x128xf32, #tpu.memory_space<vmem>>, vector<1x256x128xf32>,
    return
  }
  func.func @transform_0(%arg0: i32) -> (i32, i32) {
    %c0_i32 = arith.constant 0 : i32
    %c0_i32_0 = arith.constant 0 : i32
    %c0_i32_1 = arith.constant 0 : i32
    return %c0_i32, %c0_i32_0 : i32, i32
  }
  func.func @transform_1(%arg0: i32) -> (i32, i32, i32) {
    %c0_i32 = arith.constant 0 : i32
    %c0_i32_0 = arith.constant 0 : i32
    %c0_i32_1 = arith.constant 0 : i32
    return %arg0, %c0_i32, %c0_i32_0 : i32, i32, i32
  }
  func.func @transform_2(%arg0: i32) -> (i32, i32, i32) {
    %c0_i32 = arith.constant 0 : i32
    %c0_i32_0 = arith.constant 0 : i32
    %c0_i32_1 = arith.constant 0 : i32
    return %arg0, %c0_i32, %c0_i32_0 : i32, i32, i32
  }
}

module attributes {stable_mosaic.version = 11 : i64} {
  func.func @_proj_norm_kernel(%arg0: i32, %arg1: memref<32x128xf32, #tpu.memory_space<vmem>>, %arg2: memref<128x128xf32, #tpu.memory_space<vmem>>, %arg3: memref<1x128xf32, #tpu.memory_space<vmem>>, %arg4: memref<128x128xf32, #tpu.memory_space<vmem>>, %arg5: memref<1x128xf32, #tpu.memory_space<vmem>>, %arg6: memref<32x128xf32, #tpu.memory_space<vmem>>) attributes {dimension_semantics = [#tpu.dimension_semantics<parallel>], iteration_bounds = array<i64: 1>, scalar_prefetch = 0 : i64, scratch_operands = 0 : i64, tpu.core_type = #tpu.core_type<tc>, window_params = [{transform_indices = @transform_0, window_bounds = array<i64: 32, 128>}, {pipeline_mode = #tpu.pipeline_mode<synchronous>, transform_indices = @transform_1, window_bounds = array<i64: 128, 128>}, {pipeline_mode = #tpu.pipeline_mode<synchronous>, transform_indices = @transform_2, window_bounds = array<i64: 1, 128>}, {pipeline_mode = #tpu.pipeline_mode<synchronous>, transform_indices = @transform_3, window_bounds = array<i64: 128, 128>}, {pipeline_mode = #tpu.pipeline_mode<synchronous>, transform_indices = @transform_4, window_bounds = array<i64: 1, 128>}, {transform_indices = @transform_5, window_bounds = array<i64: 32, 128>}]} {
    %c0 = arith.constant 0 : index
    %c0_0 = arith.constant 0 : index
    %0 = vector.load %arg1[%c0, %c0_0] : memref<32x128xf32, #tpu.memory_space<vmem>>, vector<32x128xf32>
    %c0_1 = arith.constant 0 : index
    %c0_2 = arith.constant 0 : index
    %1 = vector.load %arg2[%c0_1, %c0_2] : memref<128x128xf32, #tpu.memory_space<vmem>>, vector<128x128xf32>
    %cst = arith.constant dense<0.000000e+00> : vector<32x128xf32>
    %2 = tpu.matmul %0, %1, %cst {dimension_numbers = #tpu.dot_dimension_numbers<[1], [0], [0], [1], [0, 0, 1, 1], [], []>} : vector<32x128xf32>, vector<128x128xf32>, vector<32x128xf32> -> vector<32x128xf32>
    %c0_3 = arith.constant 0 : index
    %c0_4 = arith.constant 0 : index
    %3 = vector.load %arg3[%c0_3, %c0_4] : memref<1x128xf32, #tpu.memory_space<vmem>>, vector<1x128xf32>
    %4 = vector.broadcast %3 : vector<1x128xf32> to vector<32x128xf32>
    %5 = arith.addf %2, %4 : vector<32x128xf32>
    %cst_5 = arith.constant 0.000000e+00 : f32
    %6 = vector.broadcast %cst_5 : f32 to vector<32x128xf32>
    %7 = arith.maximumf %5, %6 : vector<32x128xf32>
    %c0_6 = arith.constant 0 : index
    %c0_7 = arith.constant 0 : index
    %8 = vector.load %arg4[%c0_6, %c0_7] : memref<128x128xf32, #tpu.memory_space<vmem>>, vector<128x128xf32>
    %cst_8 = arith.constant dense<0.000000e+00> : vector<32x128xf32>
    %9 = tpu.matmul %7, %8, %cst_8 {dimension_numbers = #tpu.dot_dimension_numbers<[1], [0], [0], [1], [0, 0, 1, 1], [], []>} : vector<32x128xf32>, vector<128x128xf32>, vector<32x128xf32> -> vector<32x128xf32>
    %c0_9 = arith.constant 0 : index
    %c0_10 = arith.constant 0 : index
    %10 = vector.load %arg5[%c0_9, %c0_10] : memref<1x128xf32, #tpu.memory_space<vmem>>, vector<1x128xf32>
    %11 = vector.broadcast %10 : vector<1x128xf32> to vector<32x128xf32>
    %12 = arith.addf %9, %11 : vector<32x128xf32>
    %13 = arith.mulf %12, %12 : vector<32x128xf32>
    %cst_11 = arith.constant dense<0.000000e+00> : vector<32xf32>
    %14 = vector.multi_reduction <add>, %13, %cst_11 [1] : vector<32x128xf32> to vector<32xf32>
    %15 = vector.shape_cast %14 : vector<32xf32> to vector<32x1xf32>
    %16 = math.sqrt %15 : vector<32x1xf32>
    %cst_12 = arith.constant 9.99999996E-13 : f32
    %17 = vector.broadcast %cst_12 : f32 to vector<32x1xf32>
    %18 = arith.maximumf %16, %17 : vector<32x1xf32>
    %19 = vector.broadcast %18 : vector<32x1xf32> to vector<32x128xf32>
    %20 = arith.divf %12, %19 : vector<32x128xf32>
    %c0_13 = arith.constant 0 : index
    %c0_14 = arith.constant 0 : index
    %21 = vector.load %arg6[%c0_13, %c0_14] : memref<32x128xf32, #tpu.memory_space<vmem>>, vector<32x128xf32>
    tpu.vector_store %arg6[%c0_13, %c0_14], %20 {strides = array<i32>} : memref<32x128xf32, #tpu.memory_space<vmem>>, vector<32x128xf32>,
    return
  }
  func.func @transform_0(%arg0: i32) -> (i32, i32) {
    %c0_i32 = arith.constant 0 : i32
    %c0_i32_0 = arith.constant 0 : i32
    return %arg0, %c0_i32 : i32, i32
  }
  func.func @transform_1(%arg0: i32) -> (i32, i32) {
    %c0_i32 = arith.constant 0 : i32
    %c0_i32_0 = arith.constant 0 : i32
    %c0_i32_1 = arith.constant 0 : i32
    return %c0_i32, %c0_i32_0 : i32, i32
  }
  func.func @transform_2(%arg0: i32) -> (i32, i32) {
    %c0_i32 = arith.constant 0 : i32
    %c0_i32_0 = arith.constant 0 : i32
    %c0_i32_1 = arith.constant 0 : i32
    return %c0_i32, %c0_i32_0 : i32, i32
  }
  func.func @transform_3(%arg0: i32) -> (i32, i32) {
    %c0_i32 = arith.constant 0 : i32
    %c0_i32_0 = arith.constant 0 : i32
    %c0_i32_1 = arith.constant 0 : i32
    return %c0_i32, %c0_i32_0 : i32, i32
  }
  func.func @transform_4(%arg0: i32) -> (i32, i32) {
    %c0_i32 = arith.constant 0 : i32
    %c0_i32_0 = arith.constant 0 : i32
    %c0_i32_1 = arith.constant 0 : i32
    return %c0_i32, %c0_i32_0 : i32, i32
  }
  func.func @transform_5(%arg0: i32) -> (i32, i32) {
    %c0_i32 = arith.constant 0 : i32
    %c0_i32_0 = arith.constant 0 : i32
    return %arg0, %c0_i32 : i32, i32
  }
}

</mosaic_0001>

<llo_original>
// kernel: deeplabv3_contrast_forward.5
$region0: #{deeplabv3_contrast_forward.5}
  #allocation0 [shape = 'u32[]', space=smem, size = 0x4, offset = 0x4, fixed_abs, tag = 'smem constant byte address 0x4 - core index']
  #allocation1 [shape = 'u32[72,128]{1,0:T(1,128)}', space=vmem, size = 0x9000, scoped, tag = 'internal scratch']
  %s0 = inlined_call_operand.vmem [shape: f32[128,128], index: 0, kind: input, shape index: {}]
  %s1 = inlined_call_operand.vmem [shape: f32[128,128], index: 1, kind: input, shape index: {}]
  %s2 = inlined_call_operand.vmem [shape: f32[1,128], index: 2, kind: input, shape index: {}]
  %s3 = inlined_call_operand.vmem [shape: f32[128,128], index: 3, kind: output, shape index: {}]
  %s4 = sld [smem:[#allocation0]]
  $region22: #{deeplabv3_contrast_forward.5} parent=0
    _
  %s6 = ssub.s32 1, %s4
  %s7 = scalar_select 0, %s6, %s4
  // Predicated region
  $region2: #{deeplabv3_contrast_forward.5} parent=0 // pred_check
    _
  $region3: #{deeplabv3_contrast_forward.5} parent=0 // pred_check_branch
    %9 = sbr.rel (0) target = $region5
  $region4: #{deeplabv3_contrast_forward.5} parent=0 // pred_region
    _
  $region5: #{deeplabv3_contrast_forward.5} parent=0 // pred_fallthru
    _
  // Predicated region
  $region6: #{deeplabv3_contrast_forward.5} parent=0 // pred_check
    _
  $region7: #{deeplabv3_contrast_forward.5} parent=0 // pred_check_branch
    %11 = sbr.rel (0) target = $region9
  $region8: #{deeplabv3_contrast_forward.5} parent=0 // pred_region
    _
  $region9: #{deeplabv3_contrast_forward.5} parent=0 // pred_fallthru
    _
  // Predicated region
  $region10: #{deeplabv3_contrast_forward.5} parent=0 // pred_check
    _
  $region11: #{deeplabv3_contrast_forward.5} parent=0 // pred_check_branch
    %13 = sbr.rel (0) target = $region13
  $region12: #{deeplabv3_contrast_forward.5} parent=0 // pred_region
    _
  $region13: #{deeplabv3_contrast_forward.5} parent=0 // pred_fallthru
    _
  %v14 = vld [vmem:[%s0] sm:$0xff]
  %v15 = vld [vmem:[%s0 + $0x8] sm:$0xff]
  %v16 = vld [vmem:[%s0 + $0x10] sm:$0xff]
  %v17 = vld [vmem:[%s0 + $0x18] sm:$0xff]
  %v18 = vld [vmem:[%s0 + $0x20] sm:$0xff]
  %v19 = vld [vmem:[%s0 + $0x28] sm:$0xff]
  %v20 = vld [vmem:[%s0 + $0x30] sm:$0xff]
  %v21 = vld [vmem:[%s0 + $0x38] sm:$0xff]
  %v22 = vld [vmem:[%s0 + $0x40] sm:$0xff]
  %v23 = vld [vmem:[%s0 + $0x48] sm:$0xff]
  %v24 = vld [vmem:[%s0 + $0x50] sm:$0xff]
  %v25 = vld [vmem:[%s0 + $0x58] sm:$0xff]
  %v26 = vld [vmem:[%s0 + $0x60] sm:$0xff]
  %v27 = vld [vmem:[%s0 + $0x68] sm:$0xff]
  %v28 = vld [vmem:[%s0 + $0x70] sm:$0xff]
  %v29 = vld [vmem:[%s0 + $0x78] sm:$0xff]
  %v30 = vld [vmem:[%s1] sm:$0xff]
  %v31 = vld [vmem:[%s1 + $0x8] sm:$0xff]
  %v32 = vld [vmem:[%s1 + $0x10] sm:$0xff]
  %v33 = vld [vmem:[%s1 + $0x18] sm:$0xff]
  %v34 = vld [vmem:[%s1 + $0x20] sm:$0xff]
  %v35 = vld [vmem:[%s1 + $0x28] sm:$0xff]
  %v36 = vld [vmem:[%s1 + $0x30] sm:$0xff]
  %v37 = vld [vmem:[%s1 + $0x38] sm:$0xff]
  %v38 = vld [vmem:[%s1 + $0x40] sm:$0xff]
  %v39 = vld [vmem:[%s1 + $0x48] sm:$0xff]
  %v40 = vld [vmem:[%s1 + $0x50] sm:$0xff]
  %v41 = vld [vmem:[%s1 + $0x58] sm:$0xff]
  %v42 = vld [vmem:[%s1 + $0x60] sm:$0xff]
  %v43 = vld [vmem:[%s1 + $0x68] sm:$0xff]
  %v44 = vld [vmem:[%s1 + $0x70] sm:$0xff]
  %v45 = vld [vmem:[%s1 + $0x78] sm:$0xff]
  %v46 = vld [vmem:[%s2] sm:$0x1]
  %v48 = vperm.slane %v46, 0
  %50 = vmatpush.msra.mxu0 %v45
  %51 = vmatpush.msra.mxu0 %v44
  %52 = vmatpush.msra.mxu0 %v43
  %53 = vmatpush.msra.mxu0 %v42
  %54 = vmatpush.msra.mxu0 %v41
  %55 = vmatpush.msra.mxu0 %v40
  %56 = vmatpush.msra.mxu0 %v39
  %57 = vmatpush.msra.mxu0 %v38
  %58 = vmatpush.msra.mxu0 %v37
  %59 = vmatpush.msra.mxu0 %v36
  %60 = vmatpush.msra.mxu0 %v35
  %61 = vmatpush.msra.mxu0 %v34
  %62 = vmatpush.msra.mxu0 %v33
  %63 = vmatpush.msra.mxu0 %v32
  %64 = vmatpush.msra.mxu0 %v31
  %65 = vmatpush.msra.mxu0 %v30
  %66 = vmatmul.f32.gmra.mxu0 %v14
  %v67 = vpop.f32.mrf.mxu0
  %v68 = vadd.f32 %v48, %v67
  %69 = vmatmul.f32.gmra.mxu0 %v15
  %v70 = vpop.f32.mrf.mxu0
  %v71 = vadd.f32 %v48, %v70
  %72 = vmatmul.f32.gmra.mxu0 %v16
  %v73 = vpop.f32.mrf.mxu0
  %v74 = vadd.f32 %v48, %v73
  %75 = vmatmul.f32.gmra.mxu0 %v17
  %v76 = vpop.f32.mrf.mxu0
  %v77 = vadd.f32 %v48, %v76
  %78 = vmatmul.f32.gmra.mxu0 %v18
  %v79 = vpop.f32.mrf.mxu0
  %v80 = vadd.f32 %v48, %v79
  %81 = vmatmul.f32.gmra.mxu0 %v19
  %v82 = vpop.f32.mrf.mxu0
  %v83 = vadd.f32 %v48, %v82
  %84 = vmatmul.f32.gmra.mxu0 %v20
  %v85 = vpop.f32.mrf.mxu0
  %v86 = vadd.f32 %v48, %v85
  %87 = vmatmul.f32.gmra.mxu0 %v21
  %v88 = vpop.f32.mrf.mxu0
  %v89 = vadd.f32 %v48, %v88
  %90 = vmatmul.f32.gmra.mxu0 %v22
  %v91 = vpop.f32.mrf.mxu0
  %v92 = vadd.f32 %v48, %v91
  %93 = vmatmul.f32.gmra.mxu0 %v23
  %v94 = vpop.f32.mrf.mxu0
  %v95 = vadd.f32 %v48, %v94
  %96 = vmatmul.f32.gmra.mxu0 %v24
  %v97 = vpop.f32.mrf.mxu0
  %v98 = vadd.f32 %v48, %v97
  %99 = vmatmul.f32.gmra.mxu0 %v25
  %v100 = vpop.f32.mrf.mxu0
  %v101 = vadd.f32 %v48, %v100
  %102 = vmatmul.f32.gmra.mxu0 %v26
  %v103 = vpop.f32.mrf.mxu0
  %v104 = vadd.f32 %v48, %v103
  %105 = vmatmul.f32.gmra.mxu0 %v27
  %v106 = vpop.f32.mrf.mxu0
  %v107 = vadd.f32 %v48, %v106
  %108 = vmatmul.f32.gmra.mxu0 %v28
  %v109 = vpop.f32.mrf.mxu0
  %v110 = vadd.f32 %v48, %v109
  %111 = vmatmul.f32.gmra.mxu0 %v29
  %v112 = vpop.f32.mrf.mxu0
  %v113 = vadd.f32 %v48, %v112
  %114 = vdwg.mxu0
  %v115 = vmax.f32 %v68, 0.0
  %v116 = vmax.f32 %v71, 0.0
  %v117 = vmax.f32 %v74, 0.0
  %v118 = vmax.f32 %v77, 0.0
  %v119 = vmax.f32 %v80, 0.0
  %v120 = vmax.f32 %v83, 0.0
  %v121 = vmax.f32 %v86, 0.0
  %v122 = vmax.f32 %v89, 0.0
  %v123 = vmax.f32 %v92, 0.0
  %v124 = vmax.f32 %v95, 0.0
  %v125 = vmax.f32 %v98, 0.0
  %v126 = vmax.f32 %v101, 0.0
  %v127 = vmax.f32 %v104, 0.0
  %v128 = vmax.f32 %v107, 0.0
  %v129 = vmax.f32 %v110, 0.0
  %v130 = vmax.f32 %v113, 0.0
  %131 = vst [vmem:[%s3] sm:$0xff] %v115
  %132 = vst [vmem:[%s3 + $0x8] sm:$0xff] %v116
  %133 = vst [vmem:[%s3 + $0x10] sm:$0xff] %v117
  %134 = vst [vmem:[%s3 + $0x18] sm:$0xff] %v118
  %135 = vst [vmem:[%s3 + $0x20] sm:$0xff] %v119
  %136 = vst [vmem:[%s3 + $0x28] sm:$0xff] %v120
  %137 = vst [vmem:[%s3 + $0x30] sm:$0xff] %v121
  %138 = vst [vmem:[%s3 + $0x38] sm:$0xff] %v122
  %139 = vst [vmem:[%s3 + $0x40] sm:$0xff] %v123
  %140 = vst [vmem:[%s3 + $0x48] sm:$0xff] %v124
  %141 = vst [vmem:[%s3 + $0x50] sm:$0xff] %v125
  %142 = vst [vmem:[%s3 + $0x58] sm:$0xff] %v126
  %143 = vst [vmem:[%s3 + $0x60] sm:$0xff] %v127
  %144 = vst [vmem:[%s3 + $0x68] sm:$0xff] %v128
  %145 = vst [vmem:[%s3 + $0x70] sm:$0xff] %v129
  %146 = vst [vmem:[%s3 + $0x78] sm:$0xff] %v130
  // Predicated region
  $region14: #{deeplabv3_contrast_forward.5} parent=0 // pred_check
    _
  $region15: #{deeplabv3_contrast_forward.5} parent=0 // pred_check_branch
    %148 = sbr.rel (0) target = $region17
  $region16: #{deeplabv3_contrast_forward.5} parent=0 // pred_region
    _
  $region17: #{deeplabv3_contrast_forward.5} parent=0 // pred_fallthru
    _
  // Predicated region
  $region18: #{deeplabv3_contrast_forward.5} parent=0 // pred_check
    _
  $region19: #{deeplabv3_contrast_forward.5} parent=0 // pred_check_branch
    %150 = sbr.rel (0) target = $region21
  $region20: #{deeplabv3_contrast_forward.5} parent=0 // pred_region
    _
  $region21: #{deeplabv3_contrast_forward.5} parent=0 // pred_fallthru
    _

// kernel: deeplabv3_contrast_forward.6
$region0: #{deeplabv3_contrast_forward.6}
  #allocation0 [shape = 'u32[]', space=smem, size = 0x4, offset = 0x4, fixed_abs, tag = 'smem constant byte address 0x4 - core index']
  #allocation1 [shape = 'u32[72,128]{1,0:T(1,128)}', space=vmem, size = 0x9000, scoped, tag = 'internal scratch']
  %s0 = inlined_call_operand.vmem [shape: f32[32,256], index: 0, kind: input, shape index: {}]
  %s1 = inlined_call_operand.vmem [shape: f32[256,128], index: 1, kind: input, shape index: {}]
  %s2 = inlined_call_operand.vmem [shape: f32[1,128], index: 2, kind: input, shape index: {}]
  %s3 = inlined_call_operand.vmem [shape: f32[32,128], index: 3, kind: output, shape index: {}]
  %s4 = sld [smem:[#allocation0]]
  $region22: #{deeplabv3_contrast_forward.6} parent=0
    _
  %s6 = ssub.s32 1, %s4
  %s7 = scalar_select 0, %s6, %s4
  // Predicated region
  $region2: #{deeplabv3_contrast_forward.6} parent=0 // pred_check
    _
  $region3: #{deeplabv3_contrast_forward.6} parent=0 // pred_check_branch
    %9 = sbr.rel (0) target = $region5
  $region4: #{deeplabv3_contrast_forward.6} parent=0 // pred_region
    _
  $region5: #{deeplabv3_contrast_forward.6} parent=0 // pred_fallthru
    _
  // Predicated region
  $region6: #{deeplabv3_contrast_forward.6} parent=0 // pred_check
    _
  $region7: #{deeplabv3_contrast_forward.6} parent=0 // pred_check_branch
    %11 = sbr.rel (0) target = $region9
  $region8: #{deeplabv3_contrast_forward.6} parent=0 // pred_region
    _
  $region9: #{deeplabv3_contrast_forward.6} parent=0 // pred_fallthru
    _
  // Predicated region
  $region10: #{deeplabv3_contrast_forward.6} parent=0 // pred_check
    _
  $region11: #{deeplabv3_contrast_forward.6} parent=0 // pred_check_branch
    %13 = sbr.rel (0) target = $region13
  $region12: #{deeplabv3_contrast_forward.6} parent=0 // pred_region
    _
  $region13: #{deeplabv3_contrast_forward.6} parent=0 // pred_fallthru
    _
  %v14 = vld [vmem:[%s0] sm:$0xff]
  %v15 = vld [vmem:[%s0 + $0x8] sm:$0xff]
  %v16 = vld [vmem:[%s0 + $0x10] sm:$0xff]
  %v17 = vld [vmem:[%s0 + $0x18] sm:$0xff]
  %v18 = vld [vmem:[%s0 + $0x20] sm:$0xff]
  %v19 = vld [vmem:[%s0 + $0x28] sm:$0xff]
  %v20 = vld [vmem:[%s0 + $0x30] sm:$0xff]
  %v21 = vld [vmem:[%s0 + $0x38] sm:$0xff]
  %v22 = vld [vmem:[%s1] sm:$0xff]
  %v23 = vld [vmem:[%s1 + $0x8] sm:$0xff]
  %v24 = vld [vmem:[%s1 + $0x10] sm:$0xff]
  %v25 = vld [vmem:[%s1 + $0x18] sm:$0xff]
  %v26 = vld [vmem:[%s1 + $0x20] sm:$0xff]
  %v27 = vld [vmem:[%s1 + $0x28] sm:$0xff]
  %v28 = vld [vmem:[%s1 + $0x30] sm:$0xff]
  %v29 = vld [vmem:[%s1 + $0x38] sm:$0xff]
  %v30 = vld [vmem:[%s1 + $0x40] sm:$0xff]
  %v31 = vld [vmem:[%s1 + $0x48] sm:$0xff]
  %v32 = vld [vmem:[%s1 + $0x50] sm:$0xff]
  %v33 = vld [vmem:[%s1 + $0x58] sm:$0xff]
  %v34 = vld [vmem:[%s1 + $0x60] sm:$0xff]
  %v35 = vld [vmem:[%s1 + $0x68] sm:$0xff]
  %v36 = vld [vmem:[%s1 + $0x70] sm:$0xff]
  %v37 = vld [vmem:[%s1 + $0x78] sm:$0xff]
  %v38 = vld [vmem:[%s1 + $0x80] sm:$0xff]
  %v39 = vld [vmem:[%s1 + $0x88] sm:$0xff]
  %v40 = vld [vmem:[%s1 + $0x90] sm:$0xff]
  %v41 = vld [vmem:[%s1 + $0x98] sm:$0xff]
  %v42 = vld [vmem:[%s1 + $0xa0] sm:$0xff]
  %v43 = vld [vmem:[%s1 + $0xa8] sm:$0xff]
  %v44 = vld [vmem:[%s1 + $0xb0] sm:$0xff]
  %v45 = vld [vmem:[%s1 + $0xb8] sm:$0xff]
  %v46 = vld [vmem:[%s1 + $0xc0] sm:$0xff]
  %v47 = vld [vmem:[%s1 + $0xc8] sm:$0xff]
  %v48 = vld [vmem:[%s1 + $0xd0] sm:$0xff]
  %v49 = vld [vmem:[%s1 + $0xd8] sm:$0xff]
  %v50 = vld [vmem:[%s1 + $0xe0] sm:$0xff]
  %v51 = vld [vmem:[%s1 + $0xe8] sm:$0xff]
  %v52 = vld [vmem:[%s1 + $0xf0] sm:$0xff]
  %v53 = vld [vmem:[%s1 + $0xf8] sm:$0xff]
  %v54 = vld [vmem:[%s2] sm:$0x1]
  %v56 = vperm.slane %v54, 0
  %58 = vmatpush.msra.mxu0 %v37
  %59 = vmatpush.msra.mxu0 %v36
  %60 = vmatpush.msra.mxu0 %v35
  %61 = vmatpush.msra.mxu0 %v34
  %62 = vmatpush.msra.mxu0 %v33
  %63 = vmatpush.msra.mxu0 %v32
  %64 = vmatpush.msra.mxu0 %v31
  %65 = vmatpush.msra.mxu0 %v30
  %66 = vmatpush.msra.mxu0 %v29
  %67 = vmatpush.msra.mxu0 %v28
  %68 = vmatpush.msra.mxu0 %v27
  %69 = vmatpush.msra.mxu0 %v26
  %70 = vmatpush.msra.mxu0 %v25
  %71 = vmatpush.msra.mxu0 %v24
  %72 = vmatpush.msra.mxu0 %v23
  %73 = vmatpush.msra.mxu0 %v22
  %74 = vmatmul.f32.gmra.mxu0 %v14
  %v75 = vpop.f32.mrf.mxu0
  %v76 = vadd.f32 %v56, %v75
  %77 = vmatmul.f32.gmra.mxu0 %v16
  %v78 = vpop.f32.mrf.mxu0
  %v79 = vadd.f32 %v56, %v78
  %80 = vmatmul.f32.gmra.mxu0 %v18
  %v81 = vpop.f32.mrf.mxu0
  %v82 = vadd.f32 %v56, %v81
  %83 = vmatmul.f32.gmra.mxu0 %v20
  %v84 = vpop.f32.mrf.mxu0
  %v85 = vadd.f32 %v56, %v84
  %86 = vdwg.mxu0
  %87 = vmatpush.msra.mxu0 %v53
  %88 = vmatpush.msra.mxu0 %v52
  %89 = vmatpush.msra.mxu0 %v51
  %90 = vmatpush.msra.mxu0 %v50
  %91 = vmatpush.msra.mxu0 %v49
  %92 = vmatpush.msra.mxu0 %v48
  %93 = vmatpush.msra.mxu0 %v47
  %94 = vmatpush.msra.mxu0 %v46
  %95 = vmatpush.msra.mxu0 %v45
  %96 = vmatpush.msra.mxu0 %v44
  %97 = vmatpush.msra.mxu0 %v43
  %98 = vmatpush.msra.mxu0 %v42
  %99 = vmatpush.msra.mxu0 %v41
  %100 = vmatpush.msra.mxu0 %v40
  %101 = vmatpush.msra.mxu0 %v39
  %102 = vmatpush.msra.mxu0 %v38
  %103 = vmatmul.f32.gmra.mxu0 %v15
  %v104 = vpop.f32.mrf.mxu0
  %v105 = vadd.f32 %v76, %v104
  %106 = vmatmul.f32.gmra.mxu0 %v17
  %v107 = vpop.f32.mrf.mxu0
  %v108 = vadd.f32 %v79, %v107
  %109 = vmatmul.f32.gmra.mxu0 %v19
  %v110 = vpop.f32.mrf.mxu0
  %v111 = vadd.f32 %v82, %v110
  %112 = vmatmul.f32.gmra.mxu0 %v21
  %v113 = vpop.f32.mrf.mxu0
  %v114 = vadd.f32 %v85, %v113
  %115 = vdwg.mxu0
  %v116 = vmax.f32 %v105, 0.0
  %v117 = vmax.f32 %v108, 0.0
  %v118 = vmax.f32 %v111, 0.0
  %v119 = vmax.f32 %v114, 0.0
  %120 = vst [vmem:[%s3] sm:$0xff] %v116
  %121 = vst [vmem:[%s3 + $0x8] sm:$0xff] %v117
  %122 = vst [vmem:[%s3 + $0x10] sm:$0xff] %v118
  %123 = vst [vmem:[%s3 + $0x18] sm:$0xff] %v119
  // Predicated region
  $region14: #{deeplabv3_contrast_forward.6} parent=0 // pred_check
    _
  $region15: #{deeplabv3_contrast_forward.6} parent=0 // pred_check_branch
    %125 = sbr.rel (0) target = $region17
  $region16: #{deeplabv3_contrast_forward.6} parent=0 // pred_region
    _
  $region17: #{deeplabv3_contrast_forward.6} parent=0 // pred_fallthru
    _
  // Predicated region
  $region18: #{deeplabv3_contrast_forward.6} parent=0 // pred_check
    _
  $region19: #{deeplabv3_contrast_forward.6} parent=0 // pred_check_branch
    %127 = sbr.rel (0) target = $region21
  $region20: #{deeplabv3_contrast_forward.6} parent=0 // pred_region
    _
  $region21: #{deeplabv3_contrast_forward.6} parent=0 // pred_fallthru
    _

// kernel: deeplabv3_contrast_forward.7
$region0: #{deeplabv3_contrast_forward.7}
  #allocation0 [shape = 'u32[]', space=smem, size = 0x4, offset = 0x4, fixed_abs, tag = 'smem constant byte address 0x4 - core index']
  #allocation1 [shape = 'u32[72,128]{1,0:T(1,128)}', space=vmem, size = 0x9000, scoped, tag = 'internal scratch']
  %s0 = inlined_call_operand.vmem [shape: f32[32,128], index: 0, kind: input, shape index: {}]
  %s1 = inlined_call_operand.vmem [shape: f32[32,128], index: 1, kind: input, shape index: {}]
  %s2 = inlined_call_operand.vmem [shape: f32[128,128], index: 2, kind: input, shape index: {}]
  %s3 = inlined_call_operand.vmem [shape: f32[1,128], index: 3, kind: input, shape index: {}]
  %s4 = inlined_call_operand.vmem [shape: f32[128,128], index: 4, kind: input, shape index: {}]
  %s5 = inlined_call_operand.vmem [shape: f32[1,128], index: 5, kind: input, shape index: {}]
  %s6 = inlined_call_operand.vmem [shape: f32[128,128], index: 6, kind: input, shape index: {}]
  %s7 = inlined_call_operand.vmem [shape: f32[1,128], index: 7, kind: input, shape index: {}]
  %s8 = inlined_call_operand.vmem [shape: f32[32,128], index: 8, kind: output, shape index: {}]
  %s9 = sld [smem:[#allocation0]]
  $region42: #{deeplabv3_contrast_forward.7} parent=0
    _
  %s11 = ssub.s32 1, %s9
  %s12 = scalar_select 0, %s11, %s9
  // Predicated region
  $region2: #{deeplabv3_contrast_forward.7} parent=0 // pred_check
    _
  $region3: #{deeplabv3_contrast_forward.7} parent=0 // pred_check_branch
    %14 = sbr.rel (0) target = $region5
  $region4: #{deeplabv3_contrast_forward.7} parent=0 // pred_region
    _
  $region5: #{deeplabv3_contrast_forward.7} parent=0 // pred_fallthru
    _
  // Predicated region
  $region6: #{deeplabv3_contrast_forward.7} parent=0 // pred_check
    _
  $region7: #{deeplabv3_contrast_forward.7} parent=0 // pred_check_branch
    %16 = sbr.rel (0) target = $region9
  $region8: #{deeplabv3_contrast_forward.7} parent=0 // pred_region
    _
  $region9: #{deeplabv3_contrast_forward.7} parent=0 // pred_fallthru
    _
  // Predicated region
  $region10: #{deeplabv3_contrast_forward.7} parent=0 // pred_check
    _
  $region11: #{deeplabv3_contrast_forward.7} parent=0 // pred_check_branch
    %18 = sbr.rel (0) target = $region13
  $region12: #{deeplabv3_contrast_forward.7} parent=0 // pred_region
    _
  $region13: #{deeplabv3_contrast_forward.7} parent=0 // pred_fallthru
    _
  // Predicated region
  $region14: #{deeplabv3_contrast_forward.7} parent=0 // pred_check
    _
  $region15: #{deeplabv3_contrast_forward.7} parent=0 // pred_check_branch
    %20 = sbr.rel (0) target = $region17
  $region16: #{deeplabv3_contrast_forward.7} parent=0 // pred_region
    _
  $region17: #{deeplabv3_contrast_forward.7} parent=0 // pred_fallthru
    _
  // Predicated region
  $region18: #{deeplabv3_contrast_forward.7} parent=0 // pred_check
    _
  $region19: #{deeplabv3_contrast_forward.7} parent=0 // pred_check_branch
    %22 = sbr.rel (0) target = $region21
  $region20: #{deeplabv3_contrast_forward.7} parent=0 // pred_region
    _
  $region21: #{deeplabv3_contrast_forward.7} parent=0 // pred_fallthru
    _
  // Predicated region
  $region22: #{deeplabv3_contrast_forward.7} parent=0 // pred_check
    _
  $region23: #{deeplabv3_contrast_forward.7} parent=0 // pred_check_branch
    %24 = sbr.rel (0) target = $region25
  $region24: #{deeplabv3_contrast_forward.7} parent=0 // pred_region
    _
  $region25: #{deeplabv3_contrast_forward.7} parent=0 // pred_fallthru
    _
  // Predicated region
  $region26: #{deeplabv3_contrast_forward.7} parent=0 // pred_check
    _
  $region27: #{deeplabv3_contrast_forward.7} parent=0 // pred_check_branch
    %26 = sbr.rel (0) target = $region29
  $region28: #{deeplabv3_contrast_forward.7} parent=0 // pred_region
    _
  $region29: #{deeplabv3_contrast_forward.7} parent=0 // pred_fallthru
    _
  // Predicated region
  $region30: #{deeplabv3_contrast_forward.7} parent=0 // pred_check
    _
  $region31: #{deeplabv3_contrast_forward.7} parent=0 // pred_check_branch
    %28 = sbr.rel (0) target = $region33
  $region32: #{deeplabv3_contrast_forward.7} parent=0 // pred_region
    _
  $region33: #{deeplabv3_contrast_forward.7} parent=0 // pred_fallthru
    _
  %v29 = vld [vmem:[%s0] sm:$0xff]
  %v30 = vld [vmem:[%s0 + $0x8] sm:$0xff]
  %v31 = vld [vmem:[%s0 + $0x10] sm:$0xff]
  %v32 = vld [vmem:[%s0 + $0x18] sm:$0xff]
  %v33 = vld [vmem:[%s2] sm:$0xff]
  %v34 = vld [vmem:[%s2 + $0x8] sm:$0xff]
  %v35 = vld [vmem:[%s2 + $0x10] sm:$0xff]
  %v36 = vld [vmem:[%s2 + $0x18] sm:$0xff]
  %v37 = vld [vmem:[%s2 + $0x20] sm:$0xff]
  %v38 = vld [vmem:[%s2 + $0x28] sm:$0xff]
  %v39 = vld [vmem:[%s2 + $0x30] sm:$0xff]
  %v40 = vld [vmem:[%s2 + $0x38] sm:$0xff]
  %v41 = vld [vmem:[%s2 + $0x40] sm:$0xff]
  %v42 = vld [vmem:[%s2 + $0x48] sm:$0xff]
  %v43 = vld [vmem:[%s2 + $0x50] sm:$0xff]
  %v44 = vld [vmem:[%s2 + $0x58] sm:$0xff]
  %v45 = vld [vmem:[%s2 + $0x60] sm:$0xff]
  %v46 = vld [vmem:[%s2 + $0x68] sm:$0xff]
  %v47 = vld [vmem:[%s2 + $0x70] sm:$0xff]
  %v48 = vld [vmem:[%s2 + $0x78] sm:$0xff]
  %v49 = vld [vmem:[%s3] sm:$0x1]
  %v51 = vperm.slane %v49, 0
  %53 = vmatpush.msra.mxu0 %v48
  %54 = vmatpush.msra.mxu0 %v47
  %55 = vmatpush.msra.mxu0 %v46
  %56 = vmatpush.msra.mxu0 %v45
  %57 = vmatpush.msra.mxu0 %v44
  %58 = vmatpush.msra.mxu0 %v43
  %59 = vmatpush.msra.mxu0 %v42
  %60 = vmatpush.msra.mxu0 %v41
  %61 = vmatpush.msra.mxu0 %v40
  %62 = vmatpush.msra.mxu0 %v39
  %63 = vmatpush.msra.mxu0 %v38
  %64 = vmatpush.msra.mxu0 %v37
  %65 = vmatpush.msra.mxu0 %v36
  %66 = vmatpush.msra.mxu0 %v35
  %67 = vmatpush.msra.mxu0 %v34
  %68 = vmatpush.msra.mxu0 %v33
  %69 = vmatmul.f32.gmra.mxu0 %v29
  %v70 = vpop.f32.mrf.mxu0
  %v71 = vadd.f32 %v51, %v70
  %72 = vmatmul.f32.gmra.mxu0 %v30
  %v73 = vpop.f32.mrf.mxu0
  %v74 = vadd.f32 %v51, %v73
  %75 = vmatmul.f32.gmra.mxu0 %v31
  %v76 = vpop.f32.mrf.mxu0
  %v77 = vadd.f32 %v51, %v76
  %78 = vmatmul.f32.gmra.mxu0 %v32
  %v79 = vpop.f32.mrf.mxu0
  %v80 = vadd.f32 %v51, %v79
  %81 = vdwg.mxu0
  %v82 = vmax.f32 %v71, 0.0
  %v83 = vmax.f32 %v74, 0.0
  %v84 = vmax.f32 %v77, 0.0
  %v85 = vmax.f32 %v80, 0.0
  %v86 = vld [vmem:[%s4] sm:$0xff]
  %v87 = vld [vmem:[%s4 + $0x8] sm:$0xff]
  %v88 = vld [vmem:[%s4 + $0x10] sm:$0xff]
  %v89 = vld [vmem:[%s4 + $0x18] sm:$0xff]
  %v90 = vld [vmem:[%s4 + $0x20] sm:$0xff]
  %v91 = vld [vmem:[%s4 + $0x28] sm:$0xff]
  %v92 = vld [vmem:[%s4 + $0x30] sm:$0xff]
  %v93 = vld [vmem:[%s4 + $0x38] sm:$0xff]
  %v94 = vld [vmem:[%s4 + $0x40] sm:$0xff]
  %v95 = vld [vmem:[%s4 + $0x48] sm:$0xff]
  %v96 = vld [vmem:[%s4 + $0x50] sm:$0xff]
  %v97 = vld [vmem:[%s4 + $0x58] sm:$0xff]
  %v98 = vld [vmem:[%s4 + $0x60] sm:$0xff]
  %v99 = vld [vmem:[%s4 + $0x68] sm:$0xff]
  %v100 = vld [vmem:[%s4 + $0x70] sm:$0xff]
  %v101 = vld [vmem:[%s4 + $0x78] sm:$0xff]
  %v102 = vld [vmem:[%s1] sm:$0xff]
  %v103 = vld [vmem:[%s1 + $0x8] sm:$0xff]
  %v104 = vld [vmem:[%s1 + $0x10] sm:$0xff]
  %v105 = vld [vmem:[%s1 + $0x18] sm:$0xff]
  %106 = vmatpush.msra.mxu0 %v101
  %107 = vmatpush.msra.mxu0 %v100
  %108 = vmatpush.msra.mxu0 %v99
  %109 = vmatpush.msra.mxu0 %v98
  %110 = vmatpush.msra.mxu0 %v97
  %111 = vmatpush.msra.mxu0 %v96
  %112 = vmatpush.msra.mxu0 %v95
  %113 = vmatpush.msra.mxu0 %v94
  %114 = vmatpush.msra.mxu0 %v93
  %115 = vmatpush.msra.mxu0 %v92
  %116 = vmatpush.msra.mxu0 %v91
  %117 = vmatpush.msra.mxu0 %v90
  %118 = vmatpush.msra.mxu0 %v89
  %119 = vmatpush.msra.mxu0 %v88
  %120 = vmatpush.msra.mxu0 %v87
  %121 = vmatpush.msra.mxu0 %v86
  %122 = vmatmul.f32.gmra.mxu0 %v82
  %v123 = vpop.f32.mrf.mxu0
  %v124 = vadd.f32 %v102, %v123
  %125 = vmatmul.f32.gmra.mxu0 %v83
  %v126 = vpop.f32.mrf.mxu0
  %v127 = vadd.f32 %v103, %v126
  %128 = vmatmul.f32.gmra.mxu0 %v84
  %v129 = vpop.f32.mrf.mxu0
  %v130 = vadd.f32 %v104, %v129
  %131 = vmatmul.f32.gmra.mxu0 %v85
  %v132 = vpop.f32.mrf.mxu0
  %v133 = vadd.f32 %v105, %v132
  %134 = vdwg.mxu0
  %v135 = vld [vmem:[%s5] sm:$0x1]
  %v137 = vperm.slane %v135, 0
  %v139 = vadd.f32 %v124, %v137
  %v140 = vadd.f32 %v127, %v137
  %v141 = vadd.f32 %v130, %v137
  %v142 = vadd.f32 %v133, %v137
  %v143 = vmax.f32 %v139, 0.0
  %v144 = vmax.f32 %v140, 0.0
  %v145 = vmax.f32 %v141, 0.0
  %v146 = vmax.f32 %v142, 0.0
  %v147 = vld [vmem:[%s6] sm:$0xff]
  %v148 = vld [vmem:[%s6 + $0x8] sm:$0xff]
  %v149 = vld [vmem:[%s6 + $0x10] sm:$0xff]
  %v150 = vld [vmem:[%s6 + $0x18] sm:$0xff]
  %v151 = vld [vmem:[%s6 + $0x20] sm:$0xff]
  %v152 = vld [vmem:[%s6 + $0x28] sm:$0xff]
  %v153 = vld [vmem:[%s6 + $0x30] sm:$0xff]
  %v154 = vld [vmem:[%s6 + $0x38] sm:$0xff]
  %v155 = vld [vmem:[%s6 + $0x40] sm:$0xff]
  %v156 = vld [vmem:[%s6 + $0x48] sm:$0xff]
  %v157 = vld [vmem:[%s6 + $0x50] sm:$0xff]
  %v158 = vld [vmem:[%s6 + $0x58] sm:$0xff]
  %v159 = vld [vmem:[%s6 + $0x60] sm:$0xff]
  %v160 = vld [vmem:[%s6 + $0x68] sm:$0xff]
  %v161 = vld [vmem:[%s6 + $0x70] sm:$0xff]
  %v162 = vld [vmem:[%s6 + $0x78] sm:$0xff]
  %v163 = vld [vmem:[%s7] sm:$0x1]
  %v165 = vperm.slane %v163, 0
  %167 = vmatpush.msra.mxu0 %v162
  %168 = vmatpush.msra.mxu0 %v161
  %169 = vmatpush.msra.mxu0 %v160
  %170 = vmatpush.msra.mxu0 %v159
  %171 = vmatpush.msra.mxu0 %v158
  %172 = vmatpush.msra.mxu0 %v157
  %173 = vmatpush.msra.mxu0 %v156
  %174 = vmatpush.msra.mxu0 %v155
  %175 = vmatpush.msra.mxu0 %v154
  %176 = vmatpush.msra.mxu0 %v153
  %177 = vmatpush.msra.mxu0 %v152
  %178 = vmatpush.msra.mxu0 %v151
  %179 = vmatpush.msra.mxu0 %v150
  %180 = vmatpush.msra.mxu0 %v149
  %181 = vmatpush.msra.mxu0 %v148
  %182 = vmatpush.msra.mxu0 %v147
  %183 = vmatmul.f32.gmra.mxu0 %v143
  %v184 = vpop.f32.mrf.mxu0
  %v185 = vadd.f32 %v165, %v184
  %186 = vmatmul.f32.gmra.mxu0 %v144
  %v187 = vpop.f32.mrf.mxu0
  %v188 = vadd.f32 %v165, %v187
  %189 = vmatmul.f32.gmra.mxu0 %v145
  %v190 = vpop.f32.mrf.mxu0
  %v191 = vadd.f32 %v165, %v190
  %192 = vmatmul.f32.gmra.mxu0 %v146
  %v193 = vpop.f32.mrf.mxu0
  %v194 = vadd.f32 %v165, %v193
  %195 = vdwg.mxu0
  %196 = vst [vmem:[%s8] sm:$0xff] %v185
  %197 = vst [vmem:[%s8 + $0x8] sm:$0xff] %v188
  %198 = vst [vmem:[%s8 + $0x10] sm:$0xff] %v191
  %199 = vst [vmem:[%s8 + $0x18] sm:$0xff] %v194
  // Predicated region
  $region34: #{deeplabv3_contrast_forward.7} parent=0 // pred_check
    _
  $region35: #{deeplabv3_contrast_forward.7} parent=0 // pred_check_branch
    %201 = sbr.rel (0) target = $region37
  $region36: #{deeplabv3_contrast_forward.7} parent=0 // pred_region
    _
  $region37: #{deeplabv3_contrast_forward.7} parent=0 // pred_fallthru
    _
  // Predicated region
  $region38: #{deeplabv3_contrast_forward.7} parent=0 // pred_check
    _
  $region39: #{deeplabv3_contrast_forward.7} parent=0 // pred_check_branch
    %203 = sbr.rel (0) target = $region41
  $region40: #{deeplabv3_contrast_forward.7} parent=0 // pred_region
    _
  $region41: #{deeplabv3_contrast_forward.7} parent=0 // pred_fallthru
    _

// kernel: deeplabv3_contrast_forward.8
$region0: #{deeplabv3_contrast_forward.8}
  #allocation0 [shape = 'u32[]', space=smem, size = 0x4, offset = 0x4, fixed_abs, tag = 'smem constant byte address 0x4 - core index']
  #allocation1 [shape = 'u32[72,128]{1,0:T(1,128)}', space=vmem, size = 0x9000, scoped, tag = 'internal scratch']
  %s0 = inlined_call_operand.vmem [shape: f32[256,128], index: 0, kind: input, shape index: {}]
  %s1 = inlined_call_operand.vmem [shape: f32[2,128,128], index: 1, kind: input, shape index: {}]
  %s2 = inlined_call_operand.vmem [shape: f32[2,256,128], index: 2, kind: output, shape index: {}]
  %s3 = sld [smem:[#allocation0]]
  $region41: #{deeplabv3_contrast_forward.8} parent=0
    _
  %s5 = ssub.s32 1, %s3
  %s6 = scalar_select 0, %s5, %s3
  loop: start=0, step=1, limit=4
  $region2: #{deeplabv3_contrast_forward.8} parent=0 // loop_pre_header
    _
  $region3: #{deeplabv3_contrast_forward.8} parent=0 // loop_header
    %s8 = sphi 0, %s12
    %p9 = scmp.ge.s32.totalorder %s8, 4
    %s16 = sphi 0, %s16
    %s18 = sphi 0, %s16
    %s19 = sphi 0, %s18
    %s33 = sphi 0, %s19
    %s39 = sphi 0, %s41
    %s42 = sphi 0, %s39
    %s43 = sphi 0, %s42
    %s59 = sphi 0, %s43
    %s65 = sphi 0, %s67
    %s68 = sphi 0, %s65
    %s69 = sphi 0, %s68
    %s85 = sphi 0, %s69
  $region4: #{deeplabv3_contrast_forward.8} parent=0 // loop_header_branch
    %11 = sbr.rel (%p9) target = $region8
  $region5: #{deeplabv3_contrast_forward.8} parent=0 // loop_body
    %s13 = ssub.s32 %s8, 1
    %s14 = ssub.s32 %s8, 2
    %s15 = sadd.s32 %s8, 1
    %s17 = sadd.s32 %s16, 1
    %p20 = scmp.eq.s32.totalorder %s8, 1
    %p21 = scmp.ne.s32.totalorder %s16, %s18
    %p22 = scmp.eq.s32.totalorder %s8, 0
    %p23 = por %p21, %p22
    %p24 = scmp.ne.s32.totalorder %s16, %s18
    %p25 = scmp.eq.s32.totalorder %s13, 1
    %p26 = por %p24, %p25
    %p27 = scmp.ne.s32.totalorder %s18, %s19
    %p28 = scmp.eq.s32.totalorder %s13, 0
    %p29 = por %p27, %p28
    %p30 = scmp.ne.s32.totalorder %s18, %s19
    %p31 = scmp.eq.s32.totalorder %s14, 1
    %p32 = por %p30, %p31
    %p34 = scmp.ne.s32.totalorder %s19, %s33
    %p35 = scmp.eq.s32.totalorder %s14, 0
    %p36 = por %p34, %p35
    %s37 = ssub.s32 %s8, %s15
    %p38 = scmp.eq.s32.totalorder %s37, 0
    %s40 = sadd.s32 %s39, 1
    %s41 = scalar_select %p38, %s39, %s40
    %p44 = pneg %p38
    %p45 = scmp.eq.s32.totalorder %s8, 1
    %p46 = por %p44, %p45
    %p47 = scmp.ne.s32.totalorder %s39, %s42
    %p48 = scmp.eq.s32.totalorder %s8, 0
    %p49 = por %p47, %p48
    %p50 = scmp.ne.s32.totalorder %s39, %s42
    %p51 = scmp.eq.s32.totalorder %s13, 1
    %p52 = por %p50, %p51
    %p53 = scmp.ne.s32.totalorder %s42, %s43
    %p54 = scmp.eq.s32.totalorder %s13, 0
    %p55 = por %p53, %p54
    %p56 = scmp.ne.s32.totalorder %s42, %s43
    %p57 = scmp.eq.s32.totalorder %s14, 1
    %p58 = por %p56, %p57
    %p60 = scmp.ne.s32.totalorder %s43, %s59
    %p61 = scmp.eq.s32.totalorder %s14, 0
    %p62 = por %p60, %p61
    %s63 = ssub.s32 %s8, %s15
    %p64 = scmp.eq.s32.totalorder %s63, 0
    %s66 = sadd.s32 %s65, 1
    %s67 = scalar_select %p64, %s65, %s66
    %p70 = pneg %p64
    %p71 = scmp.eq.s32.totalorder %s8, 1
    %p72 = por %p70, %p71
    %p73 = scmp.ne.s32.totalorder %s65, %s68
    %p74 = scmp.eq.s32.totalorder %s8, 0
    %p75 = por %p73, %p74
    %p76 = scmp.ne.s32.totalorder %s65, %s68
    %p77 = scmp.eq.s32.totalorder %s13, 1
    %p78 = por %p76, %p77
    %p79 = scmp.ne.s32.totalorder %s68, %s69
    %p80 = scmp.eq.s32.totalorder %s13, 0
    %p81 = por %p79, %p80
    %p82 = scmp.ne.s32.totalorder %s68, %s69
    %p83 = scmp.eq.s32.totalorder %s14, 1
    %p84 = por %p82, %p83
    %p86 = scmp.ne.s32.totalorder %s69, %s85
    %p87 = scmp.eq.s32.totalorder %s14, 0
    %p88 = por %p86, %p87
    %p89 = scmp.le.s32.totalorder 1, %s8
    %p90 = scmp.lt.s32.totalorder %s8, 3
    %p91 = pnand %p89, %p90
    %p92 = pneg %p91
    // Predicated region
    $region9: #{deeplabv3_contrast_forward.8} parent=5 // pred_check
      _
    $region10: #{deeplabv3_contrast_forward.8} parent=5 // pred_check_branch
      %94 = sbr.rel (%p91) target = $region12
    $region11: #{deeplabv3_contrast_forward.8} parent=5 // pred_region
      %s95 = ssub.s32 %s8, 1
      // Predicated region
      $region13: #{deeplabv3_contrast_forward.8} parent=11 // pred_check
        %p96 = pneg %p29
      $region14: #{deeplabv3_contrast_forward.8} parent=11 // pred_check_branch
        %98 = sbr.rel (%p96) target = $region16
      $region15: #{deeplabv3_contrast_forward.8} parent=11 // pred_region
        _
      $region16: #{deeplabv3_contrast_forward.8} parent=11 // pred_fallthru
        _
    $region12: #{deeplabv3_contrast_forward.8} parent=5 // pred_fallthru
      _
    %p99 = scmp.lt.s32.totalorder %s8, 2
    // Predicated region
    $region17: #{deeplabv3_contrast_forward.8} parent=5 // pred_check
      %p100 = pneg %p99
    $region18: #{deeplabv3_contrast_forward.8} parent=5 // pred_check_branch
      %102 = sbr.rel (%p100) target = $region20
    $region19: #{deeplabv3_contrast_forward.8} parent=5 // pred_region
      // Predicated region
      $region21: #{deeplabv3_contrast_forward.8} parent=19 // pred_check
        %p103 = pneg %p49
      $region22: #{deeplabv3_contrast_forward.8} parent=19 // pred_check_branch
        %105 = sbr.rel (%p103) target = $region24
      $region23: #{deeplabv3_contrast_forward.8} parent=19 // pred_region
        %p106 = scmp.lt.s32.totalorder %s8, 1
        %s107 = scalar_select %p106, %s8, 1
        %s108 = smul.addr %s107, 16
        %s109 = smul.addr %s108, 8
        %s110 = scalar_lea.vmem %s1, %s109
      $region24: #{deeplabv3_contrast_forward.8} parent=19 // pred_fallthru
        _
    $region20: #{deeplabv3_contrast_forward.8} parent=5 // pred_fallthru
      _
    %p111 = scmp.le.s32.totalorder 1, %s8
    %p112 = scmp.lt.s32.totalorder %s8, 3
    %p113 = pnand %p111, %p112
    %p114 = pneg %p113
    // Predicated region
    $region25: #{deeplabv3_contrast_forward.8} parent=5 // pred_check
      _
    $region26: #{deeplabv3_contrast_forward.8} parent=5 // pred_check_branch
      %116 = sbr.rel (%p113) target = $region28
    $region27: #{deeplabv3_contrast_forward.8} parent=5 // pred_region
      %s117 = ssub.s32 %s8, 1
      %p118 = pneg %p29
      %p119 = pneg %p26
      %p120 = scmp.lt.s32.totalorder %s13, 1
      %s121 = scalar_select %p120, %s13, 1
      %s122 = smul.addr %s121, 16
      %s123 = smul.addr %s122, 8
      %s124 = scalar_lea.vmem %s1, %s123
      %p125 = pneg %p55
      %p126 = pneg %p52
      %p127 = pneg %p81
      %p128 = pneg %p78
      %p129 = scmp.lt.s32.totalorder %s13, 1
      %s130 = scalar_select %p129, %s13, 1
      %s131 = smul.addr %s130, 32
      %s132 = smul.addr %s131, 8
      %s133 = scalar_lea.vmem %s2, %s132
      %p134 = scmp.lt.s32.totalorder %s13, 1
      %s135 = scalar_select %p134, %s13, 1
      %s136 = smul.addr %s135, 16
      %s137 = smul.addr %s136, 8
      %s138 = scalar_lea.vmem %s1, %s137
      %p139 = scmp.lt.s32.totalorder %s13, 1
      %s140 = scalar_select %p139, %s13, 1
      %s141 = smul.addr %s140, 32
      %s142 = smul.addr %s141, 8
      %s143 = scalar_lea.vmem %s2, %s142
      %v144 = vld [vmem:[%s0] sm:$0xff]
      %v145 = vld [vmem:[%s0 + $0x8] sm:$0xff]
      %v146 = vld [vmem:[%s0 + $0x10] sm:$0xff]
      %v147 = vld [vmem:[%s0 + $0x18] sm:$0xff]
      %v148 = vld [vmem:[%s0 + $0x20] sm:$0xff]
      %v149 = vld [vmem:[%s0 + $0x28] sm:$0xff]
      %v150 = vld [vmem:[%s0 + $0x30] sm:$0xff]
      %v151 = vld [vmem:[%s0 + $0x38] sm:$0xff]
      %v152 = vld [vmem:[%s0 + $0x40] sm:$0xff]
      %v153 = vld [vmem:[%s0 + $0x48] sm:$0xff]
      %v154 = vld [vmem:[%s0 + $0x50] sm:$0xff]
      %v155 = vld [vmem:[%s0 + $0x58] sm:$0xff]
      %v156 = vld [vmem:[%s0 + $0x60] sm:$0xff]
      %v157 = vld [vmem:[%s0 + $0x68] sm:$0xff]
      %v158 = vld [vmem:[%s0 + $0x70] sm:$0xff]
      %v159 = vld [vmem:[%s0 + $0x78] sm:$0xff]
      %v160 = vld [vmem:[%s0 + $0x80] sm:$0xff]
      %v161 = vld [vmem:[%s0 + $0x88] sm:$0xff]
      %v162 = vld [vmem:[%s0 + $0x90] sm:$0xff]
      %v163 = vld [vmem:[%s0 + $0x98] sm:$0xff]
      %v164 = vld [vmem:[%s0 + $0xa0] sm:$0xff]
      %v165 = vld [vmem:[%s0 + $0xa8] sm:$0xff]
      %v166 = vld [vmem:[%s0 + $0xb0] sm:$0xff]
      %v167 = vld [vmem:[%s0 + $0xb8] sm:$0xff]
      %v168 = vld [vmem:[%s0 + $0xc0] sm:$0xff]
      %v169 = vld [vmem:[%s0 + $0xc8] sm:$0xff]
      %v170 = vld [vmem:[%s0 + $0xd0] sm:$0xff]
      %v171 = vld [vmem:[%s0 + $0xd8] sm:$0xff]
      %v172 = vld [vmem:[%s0 + $0xe0] sm:$0xff]
      %v173 = vld [vmem:[%s0 + $0xe8] sm:$0xff]
      %v174 = vld [vmem:[%s0 + $0xf0] sm:$0xff]
      %v175 = vld [vmem:[%s0 + $0xf8] sm:$0xff]
      %v176 = vld [vmem:[%s138] sm:$0xff]
      %v177 = vld [vmem:[%s138 + $0x8] sm:$0xff]
      %v178 = vld [vmem:[%s138 + $0x10] sm:$0xff]
      %v179 = vld [vmem:[%s138 + $0x18] sm:$0xff]
      %v180 = vld [vmem:[%s138 + $0x20] sm:$0xff]
      %v181 = vld [vmem:[%s138 + $0x28] sm:$0xff]
      %v182 = vld [vmem:[%s138 + $0x30] sm:$0xff]
      %v183 = vld [vmem:[%s138 + $0x38] sm:$0xff]
      %v184 = vld [vmem:[%s138 + $0x40] sm:$0xff]
      %v185 = vld [vmem:[%s138 + $0x48] sm:$0xff]
      %v186 = vld [vmem:[%s138 + $0x50] sm:$0xff]
      %v187 = vld [vmem:[%s138 + $0x58] sm:$0xff]
      %v188 = vld [vmem:[%s138 + $0x60] sm:$0xff]
      %v189 = vld [vmem:[%s138 + $0x68] sm:$0xff]
      %v190 = vld [vmem:[%s138 + $0x70] sm:$0xff]
      %v191 = vld [vmem:[%s138 + $0x78] sm:$0xff]
      %192 = vmatpush.msra.mxu0 %v191
      %193 = vmatpush.msra.mxu0 %v190
      %194 = vmatpush.msra.mxu0 %v189
      %195 = vmatpush.msra.mxu0 %v188
      %196 = vmatpush.msra.mxu0 %v187
      %197 = vmatpush.msra.mxu0 %v186
      %198 = vmatpush.msra.mxu0 %v185
      %199 = vmatpush.msra.mxu0 %v184
      %200 = vmatpush.msra.mxu0 %v183
      %201 = vmatpush.msra.mxu0 %v182
      %202 = vmatpush.msra.mxu0 %v181
      %203 = vmatpush.msra.mxu0 %v180
      %204 = vmatpush.msra.mxu0 %v179
      %205 = vmatpush.msra.mxu0 %v178
      %206 = vmatpush.msra.mxu0 %v177
      %207 = vmatpush.msra.mxu0 %v176
      %208 = vmatmul.f32.gmra.mxu0 %v144
      %v209 = vpop.f32.mrf.mxu0
      %v210 = vadd.f32 0.0, %v209
      %211 = vmatmul.f32.gmra.mxu0 %v145
      %v212 = vpop.f32.mrf.mxu0
      %v213 = vadd.f32 0.0, %v212
      %214 = vmatmul.f32.gmra.mxu0 %v146
      %v215 = vpop.f32.mrf.mxu0
      %v216 = vadd.f32 0.0, %v215
      %217 = vmatmul.f32.gmra.mxu0 %v147
      %v218 = vpop.f32.mrf.mxu0
      %v219 = vadd.f32 0.0, %v218
      %220 = vmatmul.f32.gmra.mxu0 %v148
      %v221 = vpop.f32.mrf.mxu0
      %v222 = vadd.f32 0.0, %v221
      %223 = vmatmul.f32.gmra.mxu0 %v149
      %v224 = vpop.f32.mrf.mxu0
      %v225 = vadd.f32 0.0, %v224
      %226 = vmatmul.f32.gmra.mxu0 %v150
      %v227 = vpop.f32.mrf.mxu0
      %v228 = vadd.f32 0.0, %v227
      %229 = vmatmul.f32.gmra.mxu0 %v151
      %v230 = vpop.f32.mrf.mxu0
      %v231 = vadd.f32 0.0, %v230
      %232 = vmatmul.f32.gmra.mxu0 %v152
      %v233 = vpop.f32.mrf.mxu0
      %v234 = vadd.f32 0.0, %v233
      %235 = vmatmul.f32.gmra.mxu0 %v153
      %v236 = vpop.f32.mrf.mxu0
      %v237 = vadd.f32 0.0, %v236
      %238 = vmatmul.f32.gmra.mxu0 %v154
      %v239 = vpop.f32.mrf.mxu0
      %v240 = vadd.f32 0.0, %v239
      %241 = vmatmul.f32.gmra.mxu0 %v155
      %v242 = vpop.f32.mrf.mxu0
      %v243 = vadd.f32 0.0, %v242
      %244 = vmatmul.f32.gmra.mxu0 %v156
      %v245 = vpop.f32.mrf.mxu0
      %v246 = vadd.f32 0.0, %v245
      %247 = vmatmul.f32.gmra.mxu0 %v157
      %v248 = vpop.f32.mrf.mxu0
      %v249 = vadd.f32 0.0, %v248
      %250 = vmatmul.f32.gmra.mxu0 %v158
      %v251 = vpop.f32.mrf.mxu0
      %v252 = vadd.f32 0.0, %v251
      %253 = vmatmul.f32.gmra.mxu0 %v159
      %v254 = vpop.f32.mrf.mxu0
      %v255 = vadd.f32 0.0, %v254
      %256 = vmatmul.f32.gmra.mxu0 %v160
      %v257 = vpop.f32.mrf.mxu0
      %v258 = vadd.f32 0.0, %v257
      %259 = vmatmul.f32.gmra.mxu0 %v161
      %v260 = vpop.f32.mrf.mxu0
      %v261 = vadd.f32 0.0, %v260
      %262 = vmatmul.f32.gmra.mxu0 %v162
      %v263 = vpop.f32.mrf.mxu0
      %v264 = vadd.f32 0.0, %v263
      %265 = vmatmul.f32.gmra.mxu0 %v163
      %v266 = vpop.f32.mrf.mxu0
      %v267 = vadd.f32 0.0, %v266
      %268 = vmatmul.f32.gmra.mxu0 %v164
      %v269 = vpop.f32.mrf.mxu0
      %v270 = vadd.f32 0.0, %v269
      %271 = vmatmul.f32.gmra.mxu0 %v165
      %v272 = vpop.f32.mrf.mxu0
      %v273 = vadd.f32 0.0, %v272
      %274 = vmatmul.f32.gmra.mxu0 %v166
      %v275 = vpop.f32.mrf.mxu0
      %v276 = vadd.f32 0.0, %v275
      %277 = vmatmul.f32.gmra.mxu0 %v167
      %v278 = vpop.f32.mrf.mxu0
      %v279 = vadd.f32 0.0, %v278
      %280 = vmatmul.f32.gmra.mxu0 %v168
      %v281 = vpop.f32.mrf.mxu0
      %v282 = vadd.f32 0.0, %v281
      %283 = vmatmul.f32.gmra.mxu0 %v169
      %v284 = vpop.f32.mrf.mxu0
      %v285 = vadd.f32 0.0, %v284
      %286 = vmatmul.f32.gmra.mxu0 %v170
      %v287 = vpop.f32.mrf.mxu0
      %v288 = vadd.f32 0.0, %v287
      %289 = vmatmul.f32.gmra.mxu0 %v171
      %v290 = vpop.f32.mrf.mxu0
      %v291 = vadd.f32 0.0, %v290
      %292 = vmatmul.f32.gmra.mxu0 %v172
      %v293 = vpop.f32.mrf.mxu0
      %v294 = vadd.f32 0.0, %v293
      %295 = vmatmul.f32.gmra.mxu0 %v173
      %v296 = vpop.f32.mrf.mxu0
      %v297 = vadd.f32 0.0, %v296
      %298 = vmatmul.f32.gmra.mxu0 %v174
      %v299 = vpop.f32.mrf.mxu0
      %v300 = vadd.f32 0.0, %v299
      %301 = vmatmul.f32.gmra.mxu0 %v175
      %v302 = vpop.f32.mrf.mxu0
      %v303 = vadd.f32 0.0, %v302
      %304 = vdwg.mxu0
      %305 = vst [vmem:[%s143] sm:$0xff] %v210
      %306 = vst [vmem:[%s143 + $0x8] sm:$0xff] %v213
      %307 = vst [vmem:[%s143 + $0x10] sm:$0xff] %v216
      %308 = vst [vmem:[%s143 + $0x18] sm:$0xff] %v219
      %309 = vst [vmem:[%s143 + $0x20] sm:$0xff] %v222
      %310 = vst [vmem:[%s143 + $0x28] sm:$0xff] %v225
      %311 = vst [vmem:[%s143 + $0x30] sm:$0xff] %v228
      %312 = vst [vmem:[%s143 + $0x38] sm:$0xff] %v231
      %313 = vst [vmem:[%s143 + $0x40] sm:$0xff] %v234
      %314 = vst [vmem:[%s143 + $0x48] sm:$0xff] %v237
      %315 = vst [vmem:[%s143 + $0x50] sm:$0xff] %v240
      %316 = vst [vmem:[%s143 + $0x58] sm:$0xff] %v243
      %317 = vst [vmem:[%s143 + $0x60] sm:$0xff] %v246
      %318 = vst [vmem:[%s143 + $0x68] sm:$0xff] %v249
      %319 = vst [vmem:[%s143 + $0x70] sm:$0xff] %v252
      %320 = vst [vmem:[%s143 + $0x78] sm:$0xff] %v255
      %321 = vst [vmem:[%s143 + $0x80] sm:$0xff] %v258
      %322 = vst [vmem:[%s143 + $0x88] sm:$0xff] %v261
      %323 = vst [vmem:[%s143 + $0x90] sm:$0xff] %v264
      %324 = vst [vmem:[%s143 + $0x98] sm:$0xff] %v267
      %325 = vst [vmem:[%s143 + $0xa0] sm:$0xff] %v270
      %326 = vst [vmem:[%s143 + $0xa8] sm:$0xff] %v273
      %327 = vst [vmem:[%s143 + $0xb0] sm:$0xff] %v276
      %328 = vst [vmem:[%s143 + $0xb8] sm:$0xff] %v279
      %329 = vst [vmem:[%s143 + $0xc0] sm:$0xff] %v282
      %330 = vst [vmem:[%s143 + $0xc8] sm:$0xff] %v285
      %331 = vst [vmem:[%s143 + $0xd0] sm:$0xff] %v288
      %332 = vst [vmem:[%s143 + $0xd8] sm:$0xff] %v291
      %333 = vst [vmem:[%s143 + $0xe0] sm:$0xff] %v294
      %334 = vst [vmem:[%s143 + $0xe8] sm:$0xff] %v297
      %335 = vst [vmem:[%s143 + $0xf0] sm:$0xff] %v300
      %336 = vst [vmem:[%s143 + $0xf8] sm:$0xff] %v303
      %p337 = scmp.lt.s32.totalorder %s13, 1
      %s338 = scalar_select %p337, %s13, 1
      %s339 = smul.addr %s338, 32
      %s340 = smul.addr %s339, 8
      %s341 = scalar_lea.vmem %s2, %s340
      // Predicated region
      $region29: #{deeplabv3_contrast_forward.8} parent=27 // pred_check
        %p342 = pneg %p78
      $region30: #{deeplabv3_contrast_forward.8} parent=27 // pred_check_branch
        %344 = sbr.rel (%p342) target = $region32
      $region31: #{deeplabv3_contrast_forward.8} parent=27 // pred_region
        _
      $region32: #{deeplabv3_contrast_forward.8} parent=27 // pred_fallthru
        _
    $region28: #{deeplabv3_contrast_forward.8} parent=5 // pred_fallthru
      _
    %p345 = scmp.le.s32.totalorder 2, %s8
    // Predicated region
    $region33: #{deeplabv3_contrast_forward.8} parent=5 // pred_check
      %p346 = pneg %p345
    $region34: #{deeplabv3_contrast_forward.8} parent=5 // pred_check_branch
      %348 = sbr.rel (%p346) target = $region36
    $region35: #{deeplabv3_contrast_forward.8} parent=5 // pred_region
      %s349 = ssub.s32 %s8, 2
      // Predicated region
      $region37: #{deeplabv3_contrast_forward.8} parent=35 // pred_check
        %p350 = pneg %p84
      $region38: #{deeplabv3_contrast_forward.8} parent=35 // pred_check_branch
        %352 = sbr.rel (%p350) target = $region40
      $region39: #{deeplabv3_contrast_forward.8} parent=35 // pred_region
        %p353 = scmp.lt.s32.totalorder %s14, 1
        %s354 = scalar_select %p353, %s14, 1
        %s355 = smul.addr %s354, 32
        %s356 = smul.addr %s355, 8
        %s357 = scalar_lea.vmem %s2, %s356
      $region40: #{deeplabv3_contrast_forward.8} parent=35 // pred_fallthru
        _
    $region36: #{deeplabv3_contrast_forward.8} parent=5 // pred_fallthru
      _
  $region6: #{deeplabv3_contrast_forward.8} parent=0 // loop_footer
    %s12 = sadd.s32 1, %s8
  $region7: #{deeplabv3_contrast_forward.8} parent=0 // loop_footer_branch
    %7 = sbr.rel target = $region3
  $region8: #{deeplabv3_contrast_forward.8} parent=0 // loop_exit
    _

// kernel: deeplabv3_contrast_forward.9
$region0: #{deeplabv3_contrast_forward.9}
  #allocation0 [shape = 'u32[]', space=smem, size = 0x4, offset = 0x4, fixed_abs, tag = 'smem constant byte address 0x4 - core index']
  #allocation1 [shape = 'u32[72,128]{1,0:T(1,128)}', space=vmem, size = 0x9000, scoped, tag = 'internal scratch']
  %s0 = inlined_call_operand.vmem [shape: f32[32,128], index: 0, kind: input, shape index: {}]
  %s1 = inlined_call_operand.vmem [shape: f32[128,128], index: 1, kind: input, shape index: {}]
  %s2 = inlined_call_operand.vmem [shape: f32[1,128], index: 2, kind: input, shape index: {}]
  %s3 = inlined_call_operand.vmem [shape: f32[128,128], index: 3, kind: input, shape index: {}]
  %s4 = inlined_call_operand.vmem [shape: f32[1,128], index: 4, kind: input, shape index: {}]
  %s5 = inlined_call_operand.vmem [shape: f32[32,128], index: 5, kind: output, shape index: {}]
  %s6 = sld [smem:[#allocation0]]
  $region30: #{deeplabv3_contrast_forward.9} parent=0
    _
  %s8 = ssub.s32 1, %s6
  %s9 = scalar_select 0, %s8, %s6
  // Predicated region
  $region2: #{deeplabv3_contrast_forward.9} parent=0 // pred_check
    _
  $region3: #{deeplabv3_contrast_forward.9} parent=0 // pred_check_branch
    %11 = sbr.rel (0) target = $region5
  $region4: #{deeplabv3_contrast_forward.9} parent=0 // pred_region
    _
  $region5: #{deeplabv3_contrast_forward.9} parent=0 // pred_fallthru
    _
  // Predicated region
  $region6: #{deeplabv3_contrast_forward.9} parent=0 // pred_check
    _
  $region7: #{deeplabv3_contrast_forward.9} parent=0 // pred_check_branch
    %13 = sbr.rel (0) target = $region9
  $region8: #{deeplabv3_contrast_forward.9} parent=0 // pred_region
    _
  $region9: #{deeplabv3_contrast_forward.9} parent=0 // pred_fallthru
    _
  // Predicated region
  $region10: #{deeplabv3_contrast_forward.9} parent=0 // pred_check
    _
  $region11: #{deeplabv3_contrast_forward.9} parent=0 // pred_check_branch
    %15 = sbr.rel (0) target = $region13
  $region12: #{deeplabv3_contrast_forward.9} parent=0 // pred_region
    _
  $region13: #{deeplabv3_contrast_forward.9} parent=0 // pred_fallthru
    _
  // Predicated region
  $region14: #{deeplabv3_contrast_forward.9} parent=0 // pred_check
    _
  $region15: #{deeplabv3_contrast_forward.9} parent=0 // pred_check_branch
    %17 = sbr.rel (0) target = $region17
  $region16: #{deeplabv3_contrast_forward.9} parent=0 // pred_region
    _
  $region17: #{deeplabv3_contrast_forward.9} parent=0 // pred_fallthru
    _
  // Predicated region
  $region18: #{deeplabv3_contrast_forward.9} parent=0 // pred_check
    _
  $region19: #{deeplabv3_contrast_forward.9} parent=0 // pred_check_branch
    %19 = sbr.rel (0) target = $region21
  $region20: #{deeplabv3_contrast_forward.9} parent=0 // pred_region
    _
  $region21: #{deeplabv3_contrast_forward.9} parent=0 // pred_fallthru
    _
  %v20 = vld [vmem:[%s0] sm:$0xff]
  %v21 = vld [vmem:[%s0 + $0x8] sm:$0xff]
  %v22 = vld [vmem:[%s0 + $0x10] sm:$0xff]
  %v23 = vld [vmem:[%s0 + $0x18] sm:$0xff]
  %v24 = vld [vmem:[%s1] sm:$0xff]
  %v25 = vld [vmem:[%s1 + $0x8] sm:$0xff]
  %v26 = vld [vmem:[%s1 + $0x10] sm:$0xff]
  %v27 = vld [vmem:[%s1 + $0x18] sm:$0xff]
  %v28 = vld [vmem:[%s1 + $0x20] sm:$0xff]
  %v29 = vld [vmem:[%s1 + $0x28] sm:$0xff]
  %v30 = vld [vmem:[%s1 + $0x30] sm:$0xff]
  %v31 = vld [vmem:[%s1 + $0x38] sm:$0xff]
  %v32 = vld [vmem:[%s1 + $0x40] sm:$0xff]
  %v33 = vld [vmem:[%s1 + $0x48] sm:$0xff]
  %v34 = vld [vmem:[%s1 + $0x50] sm:$0xff]
  %v35 = vld [vmem:[%s1 + $0x58] sm:$0xff]
  %v36 = vld [vmem:[%s1 + $0x60] sm:$0xff]
  %v37 = vld [vmem:[%s1 + $0x68] sm:$0xff]
  %v38 = vld [vmem:[%s1 + $0x70] sm:$0xff]
  %v39 = vld [vmem:[%s1 + $0x78] sm:$0xff]
  %v40 = vld [vmem:[%s2] sm:$0x1]
  %v42 = vperm.slane %v40, 0
  %44 = vmatpush.msra.mxu0 %v39
  %45 = vmatpush.msra.mxu0 %v38
  %46 = vmatpush.msra.mxu0 %v37
  %47 = vmatpush.msra.mxu0 %v36
  %48 = vmatpush.msra.mxu0 %v35
  %49 = vmatpush.msra.mxu0 %v34
  %50 = vmatpush.msra.mxu0 %v33
  %51 = vmatpush.msra.mxu0 %v32
  %52 = vmatpush.msra.mxu0 %v31
  %53 = vmatpush.msra.mxu0 %v30
  %54 = vmatpush.msra.mxu0 %v29
  %55 = vmatpush.msra.mxu0 %v28
  %56 = vmatpush.msra.mxu0 %v27
  %57 = vmatpush.msra.mxu0 %v26
  %58 = vmatpush.msra.mxu0 %v25
  %59 = vmatpush.msra.mxu0 %v24
  %60 = vmatmul.f32.gmra.mxu0 %v20
  %v61 = vpop.f32.mrf.mxu0
  %v62 = vadd.f32 %v42, %v61
  %63 = vmatmul.f32.gmra.mxu0 %v21
  %v64 = vpop.f32.mrf.mxu0
  %v65 = vadd.f32 %v42, %v64
  %66 = vmatmul.f32.gmra.mxu0 %v22
  %v67 = vpop.f32.mrf.mxu0
  %v68 = vadd.f32 %v42, %v67
  %69 = vmatmul.f32.gmra.mxu0 %v23
  %v70 = vpop.f32.mrf.mxu0
  %v71 = vadd.f32 %v42, %v70
  %72 = vdwg.mxu0
  %v73 = vmax.f32 %v62, 0.0
  %v74 = vmax.f32 %v65, 0.0
  %v75 = vmax.f32 %v68, 0.0
  %v76 = vmax.f32 %v71, 0.0
  %v77 = vld [vmem:[%s3] sm:$0xff]
  %v78 = vld [vmem:[%s3 + $0x8] sm:$0xff]
  %v79 = vld [vmem:[%s3 + $0x10] sm:$0xff]
  %v80 = vld [vmem:[%s3 + $0x18] sm:$0xff]
  %v81 = vld [vmem:[%s3 + $0x20] sm:$0xff]
  %v82 = vld [vmem:[%s3 + $0x28] sm:$0xff]
  %v83 = vld [vmem:[%s3 + $0x30] sm:$0xff]
  %v84 = vld [vmem:[%s3 + $0x38] sm:$0xff]
  %v85 = vld [vmem:[%s3 + $0x40] sm:$0xff]
  %v86 = vld [vmem:[%s3 + $0x48] sm:$0xff]
  %v87 = vld [vmem:[%s3 + $0x50] sm:$0xff]
  %v88 = vld [vmem:[%s3 + $0x58] sm:$0xff]
  %v89 = vld [vmem:[%s3 + $0x60] sm:$0xff]
  %v90 = vld [vmem:[%s3 + $0x68] sm:$0xff]
  %v91 = vld [vmem:[%s3 + $0x70] sm:$0xff]
  %v92 = vld [vmem:[%s3 + $0x78] sm:$0xff]
  %v93 = vld [vmem:[%s4] sm:$0x1]
  %v95 = vperm.slane %v93, 0
  %97 = vmatpush.msra.mxu0 %v92
  %98 = vmatpush.msra.mxu0 %v91
  %99 = vmatpush.msra.mxu0 %v90
  %100 = vmatpush.msra.mxu0 %v89
  %101 = vmatpush.msra.mxu0 %v88
  %102 = vmatpush.msra.mxu0 %v87
  %103 = vmatpush.msra.mxu0 %v86
  %104 = vmatpush.msra.mxu0 %v85
  %105 = vmatpush.msra.mxu0 %v84
  %106 = vmatpush.msra.mxu0 %v83
  %107 = vmatpush.msra.mxu0 %v82
  %108 = vmatpush.msra.mxu0 %v81
  %109 = vmatpush.msra.mxu0 %v80
  %110 = vmatpush.msra.mxu0 %v79
  %111 = vmatpush.msra.mxu0 %v78
  %112 = vmatpush.msra.mxu0 %v77
  %113 = vmatmul.f32.gmra.mxu0 %v73
  %v114 = vpop.f32.mrf.mxu0
  %v115 = vadd.f32 %v95, %v114
  %116 = vmatmul.f32.gmra.mxu0 %v74
  %v117 = vpop.f32.mrf.mxu0
  %v118 = vadd.f32 %v95, %v117
  %119 = vmatmul.f32.gmra.mxu0 %v75
  %v120 = vpop.f32.mrf.mxu0
  %v121 = vadd.f32 %v95, %v120
  %122 = vmatmul.f32.gmra.mxu0 %v76
  %v123 = vpop.f32.mrf.mxu0
  %v124 = vadd.f32 %v95, %v123
  %125 = vdwg.mxu0
  %v126 = vmul.f32 %v115, %v115
  %v127 = vmul.f32 %v118, %v118
  %v128 = vmul.f32 %v121, %v121
  %v129 = vmul.f32 %v124, %v124
  %130 = vadd.xlane.f32.xlu0 %v126
  %v131 = vpop.xlane.xlu0 %130
  %132 = vadd.xlane.f32.xlu0 %v127
  %v133 = vpop.xlane.xlu0 %132
  %134 = vadd.xlane.f32.xlu0 %v128
  %v135 = vpop.xlane.xlu0 %134
  %136 = vadd.xlane.f32.xlu0 %v129
  %v137 = vpop.xlane.xlu0 %136
  %v138 = vrsqrt.pop %v131
  %v139 = vmul.f32 %v138, %v131
  %v140 = vmul.f32 %v139, %v138
  %v141 = vmul.f32 0.5, %v140
  %v142 = vsub.f32 1.5, %v141
  %v143 = vmul.f32 %v138, %v142
  %v144 = vmul.f32 %v131, %v143
  %vm145 = vcmp.eq.f32.partialorder %v131, inf
  %v146 = vsel %vm145, %v131, %v144
  %vm147 = vcmp.eq.f32.partialorder %v131, 0.0
  %v148 = vand.u32 %v131, 2147483648
  %v149 = vsel %vm147, %v148, %v146
  %v150 = vrsqrt.pop %v133
  %v151 = vmul.f32 %v150, %v133
  %v152 = vmul.f32 %v151, %v150
  %v153 = vmul.f32 0.5, %v152
  %v154 = vsub.f32 1.5, %v153
  %v155 = vmul.f32 %v150, %v154
  %v156 = vmul.f32 %v133, %v155
  %vm157 = vcmp.eq.f32.partialorder %v133, inf
  %v158 = vsel %vm157, %v133, %v156
  %vm159 = vcmp.eq.f32.partialorder %v133, 0.0
  %v160 = vand.u32 %v133, 2147483648
  %v161 = vsel %vm159, %v160, %v158
  %v162 = vrsqrt.pop %v135
  %v163 = vmul.f32 %v162, %v135
  %v164 = vmul.f32 %v163, %v162
  %v165 = vmul.f32 0.5, %v164
  %v166 = vsub.f32 1.5, %v165
  %v167 = vmul.f32 %v162, %v166
  %v168 = vmul.f32 %v135, %v167
  %vm169 = vcmp.eq.f32.partialorder %v135, inf
  %v170 = vsel %vm169, %v135, %v168
  %vm171 = vcmp.eq.f32.partialorder %v135, 0.0
  %v172 = vand.u32 %v135, 2147483648
  %v173 = vsel %vm171, %v172, %v170
  %v174 = vrsqrt.pop %v137
  %v175 = vmul.f32 %v174, %v137
  %v176 = vmul.f32 %v175, %v174
  %v177 = vmul.f32 0.5, %v176
  %v178 = vsub.f32 1.5, %v177
  %v179 = vmul.f32 %v174, %v178
  %v180 = vmul.f32 %v137, %v179
  %vm181 = vcmp.eq.f32.partialorder %v137, inf
  %v182 = vsel %vm181, %v137, %v180
  %vm183 = vcmp.eq.f32.partialorder %v137, 0.0
  %v184 = vand.u32 %v137, 2147483648
  %v185 = vsel %vm183, %v184, %v182
  %v186 = vmax.f32 %v149, 1e-12
  %v187 = vmax.f32 %v161, 1e-12
  %v188 = vmax.f32 %v173, 1e-12
  %v189 = vmax.f32 %v185, 1e-12
  %v190 = vrcp.pop %v186
  %v191 = vmul.f32 %v186, %v190
  %v192 = vsub.f32 1.0, %v191
  %v193 = vmul.f32 %v190, %v192
  %v194 = vadd.f32 %v190, %v193
  %vm195 = vweird.f32 %v186
  %vm196 = vweird.f32 %v190
  %vm197 = vmor %vm195, %vm196
  %v198 = vsel %vm197, %v190, %v194
  %v199 = vand.u32 2147483647, %v186
  %vm200 = vcmp.eq.f32.partialorder %v199, 8.507059e+37
  %v201 = vand.u32 %v186, 2147483648
  %v202 = vor.u32 1.1754944e-38, %v201
  %v203 = vsel %vm200, %v202, %v198
  %v204 = vmul.f32 %v115, %v203
  %v205 = vrcp.pop %v187
  %v206 = vmul.f32 %v187, %v205
  %v207 = vsub.f32 1.0, %v206
  %v208 = vmul.f32 %v205, %v207
  %v209 = vadd.f32 %v205, %v208
  %vm210 = vweird.f32 %v187
  %vm211 = vweird.f32 %v205
  %vm212 = vmor %vm210, %vm211
  %v213 = vsel %vm212, %v205, %v209
  %v214 = vand.u32 2147483647, %v187
  %vm215 = vcmp.eq.f32.partialorder %v214, 8.507059e+37
  %v216 = vand.u32 %v187, 2147483648
  %v217 = vor.u32 1.1754944e-38, %v216
  %v218 = vsel %vm215, %v217, %v213
  %v219 = vmul.f32 %v118, %v218
  %v220 = vrcp.pop %v188
  %v221 = vmul.f32 %v188, %v220
  %v222 = vsub.f32 1.0, %v221
  %v223 = vmul.f32 %v220, %v222
  %v224 = vadd.f32 %v220, %v223
  %vm225 = vweird.f32 %v188
  %vm226 = vweird.f32 %v220
  %vm227 = vmor %vm225, %vm226
  %v228 = vsel %vm227, %v220, %v224
  %v229 = vand.u32 2147483647, %v188
  %vm230 = vcmp.eq.f32.partialorder %v229, 8.507059e+37
  %v231 = vand.u32 %v188, 2147483648
  %v232 = vor.u32 1.1754944e-38, %v231
  %v233 = vsel %vm230, %v232, %v228
  %v234 = vmul.f32 %v121, %v233
  %v235 = vrcp.pop %v189
  %v236 = vmul.f32 %v189, %v235
  %v237 = vsub.f32 1.0, %v236
  %v238 = vmul.f32 %v235, %v237
  %v239 = vadd.f32 %v235, %v238
  %vm240 = vweird.f32 %v189
  %vm241 = vweird.f32 %v235
  %vm242 = vmor %vm240, %vm241
  %v243 = vsel %vm242, %v235, %v239
  %v244 = vand.u32 2147483647, %v189
  %vm245 = vcmp.eq.f32.partialorder %v244, 8.507059e+37
  %v246 = vand.u32 %v189, 2147483648
  %v247 = vor.u32 1.1754944e-38, %v246
  %v248 = vsel %vm245, %v247, %v243
  %v249 = vmul.f32 %v124, %v248
  %250 = vst [vmem:[%s5] sm:$0xff] %v204
  %251 = vst [vmem:[%s5 + $0x8] sm:$0xff] %v219
  %252 = vst [vmem:[%s5 + $0x10] sm:$0xff] %v234
  %253 = vst [vmem:[%s5 + $0x18] sm:$0xff] %v249
  // Predicated region
  $region22: #{deeplabv3_contrast_forward.9} parent=0 // pred_check
    _
  $region23: #{deeplabv3_contrast_forward.9} parent=0 // pred_check_branch
    %255 = sbr.rel (0) target = $region25
  $region24: #{deeplabv3_contrast_forward.9} parent=0 // pred_region
    _
  $region25: #{deeplabv3_contrast_forward.9} parent=0 // pred_fallthru
    _
  // Predicated region
  $region26: #{deeplabv3_contrast_forward.9} parent=0 // pred_check
    _
  $region27: #{deeplabv3_contrast_forward.9} parent=0 // pred_check_branch
    %257 = sbr.rel (0) target = $region29
  $region28: #{deeplabv3_contrast_forward.9} parent=0 // pred_region
    _
  $region29: #{deeplabv3_contrast_forward.9} parent=0 // pred_fallthru
    _

</llo_original>
